<compile_context>
chip_gen: v6e
topology: v6e:2x2x1
jax: 0.10.0
libtpu: 0.0.40
codegen_flags: <defaults>
</compile_context>

<pallas_src>
import jax
import jax.numpy as jnp
from jax import lax
from jax.experimental import pallas as pl
from jax.experimental.pallas import tpu as pltpu


_VMEM_TILE_BUDGET = 24 * 1024 * 1024   # pipeline buffers + intermediates; fits v5e/v6e/v7x
_VMEM_LIMIT_BYTES = 48 * 1024 * 1024   # scoped-VMEM limit: headroom, still < v7x's 64 MiB
_MAX_TILE_M = 4096                     # per review: 2048-4096 amortizes per-step overhead


def _bilinear_disc_kernel(bias_ref, c_ref, hpl_ref, hmi_ref, w_ref, out_ref):
    # cW[m, i] = sum_j c[m, j] * W[i, j]  == c @ W.T, with the transpose folded
    # into the contraction dims (no per-grid-step transpose op).
    cW = lax.dot_general(
        c_ref[...], w_ref[...],
        dimension_numbers=(((1,), (1,)), ((), ())),
        preferred_element_type=jnp.float32)                      # (tile_m, H) f32

    # f32 upcast for the elementwise path: keeps multiply/reduce in f32 on
    # every generation (v5e's VPU has no bf16).
    hpl = hpl_ref[...].astype(jnp.float32)
    hmi = hmi_ref[...].astype(jnp.float32)

    # Row-wise dot products reduced in the NATURAL orientation on the MXU:
    # (tile_m, H) @ (H, 1) -> (tile_m, 1).  No large operand is transposed,
    # so the XLU never becomes the saturating slot.
    ones_col = jnp.ones((cW.shape[1], 1), jnp.float32)
    s1 = lax.dot_general(hpl * cW, ones_col,
                         dimension_numbers=(((1,), (0,)), ((), ())),
                         preferred_element_type=jnp.float32)     # (tile_m, 1)
    s2 = lax.dot_general(hmi * cW, ones_col,
                         dimension_numbers=(((1,), (0,)), ((), ())),
                         preferred_element_type=jnp.float32)     # (tile_m, 1)

    bias = bias_ref[0]
    # Single fused store: column 0 = sc1, column 1 = sc2.
    out_ref[...] = jnp.concatenate([s1, s2], axis=1) + bias      # (tile_m, 2)


def _choose_tile_m(M, H, in_itemsize):
    """Pick a large, 128-aligned row tile that fits the VMEM budget."""
    if M <= 128:
        return int(M)                    # single block covering the whole row dim
    fixed = 2 * H * H * in_itemsize                        # double-buffered weight
    per_row = (3 * 2 * H * in_itemsize                     # 3 row inputs, double-buffered
               + 4 * H * 4                                 # cW + elementwise products (f32)
               + 2 * 2 * 4)                                # (tile_m, 2) f32 out, double-buffered
    max_rows = max(128, (_VMEM_TILE_BUDGET - fixed) // per_row)
    tile = min(_MAX_TILE_M, max_rows)
    tile = min(tile, pl.cdiv(M, 2))      # >= 2 grid steps so both v7x TCs get work
    tile = max(128, ((tile + 127) // 128) * 128)
    # Best effort: make the grid-step count even so v7x's two TensorCores
    # split the "parallel" axis evenly (an odd count leaves one TC 2:1 idle).
    g = pl.cdiv(M, tile)
    while g > 1 and g % 2 == 1 and tile > 128:
        tile -= 128
        g = pl.cdiv(M, tile)
    return int(tile)


def discriminator_mi_forward(c, h_pl, h_mi, weight, bias,
                             s_bias1=None, s_bias2=None, *, force_pallas=None):
    """c, h_pl, h_mi: (B, N, n_h). weight: (n_h, n_h). bias: (1,). -> (B, 2N)."""
    B, N, H = c.shape
    M = B * N

    use_pallas = force_pallas
    if use_pallas is None:
        # Tiny problems are pure fixed overhead as a kernel.
        use_pallas = (M * H >= 64 * 1024)

    if not use_pallas:
        sc1 = jnp.einsum('bni,ij,bnj->bn', h_pl, weight, c) + bias[0]
        sc2 = jnp.einsum('bni,ij,bnj->bn', h_mi, weight, c) + bias[0]
    else:
        # No pad, no input dtype cast: stream the inputs exactly as they sit
        # in HBM (the kernel is HBM-bound at ~H/6 flop/byte).
        c2 = c.reshape(M, H)
        hpl2 = h_pl.reshape(M, H)
        hmi2 = h_mi.reshape(M, H)
        w = weight.astype(c2.dtype)              # tiny (H, H): cast is negligible
        bias32 = bias.astype(jnp.float32)

        itemsize = jnp.dtype(c2.dtype).itemsize
        tile_m = _choose_tile_m(M, H, itemsize)
        grid_m = int(pl.cdiv(M, tile_m))         # last block may be ragged

        row_spec = pl.BlockSpec((tile_m, H), lambda i: (i, 0))
        # Grid-invariant weight block (constant index map) -> fetched once.
        w_spec = pl.BlockSpec((H, H), lambda i: (0, 0))
        out_spec = pl.BlockSpec((tile_m, 2), lambda i: (i, 0))

        flops = 2 * M * H * H + 8 * M * H
        bytes_accessed = 3 * M * H * itemsize + H * H * itemsize + M * 2 * 4 + 4

        out = pl.pallas_call(
            _bilinear_disc_kernel,
            out_shape=jax.ShapeDtypeStruct((M, 2), jnp.float32),
            grid=(grid_m,),
            in_specs=[
                pl.BlockSpec(memory_space=pltpu.MemorySpace.SMEM),  # bias scalar
                row_spec,   # c
                row_spec,   # h_pl
                row_spec,   # h_mi
                w_spec,     # bilinear weight
            ],
            out_specs=out_spec,
            compiler_params=pltpu.CompilerParams(
                dimension_semantics=("parallel",),
                vmem_limit_bytes=_VMEM_LIMIT_BYTES),
            cost_estimate=pl.CostEstimate(
                flops=int(flops), transcendentals=0,
                bytes_accessed=int(bytes_accessed)),
        )(bias32, c2, hpl2, hmi2, w)

        sc1 = out[:, 0].reshape(B, N)
        sc2 = out[:, 1].reshape(B, N)

    if s_bias1 is not None:
        sc1 = sc1 + s_bias1
    if s_bias2 is not None:
        sc2 = sc2 + s_bias2
    return jnp.concatenate([sc1, sc2], axis=1)   # (B, 2N)


def init_params(key, n_h):
    # nn.Bilinear(n_h, n_h, 1): weight (1, n_h, n_h) -> stored (n_h, n_h) here.
    # xavier_uniform_: fan_in = n_h*n_h, fan_out = n_h; bias filled with 0.
    fan_in = n_h * n_h
    fan_out = n_h
    bound = (6.0 / (fan_in + fan_out)) ** 0.5
    weight = jax.random.uniform(key, (n_h, n_h), jnp.float32, -bound, bound)
    bias = jnp.zeros((1,), jnp.float32)
    return weight, bias


if __name__ == "__main__":
    key = jax.random.PRNGKey(0)

    # --- Pallas path, f32, shapes that exercise a ragged last block ---
    B, N, n_h = 2, 200, 128          # M = 400 -> tile_m = 256, grid = 2 (last block ragged)
    kw, kc, kp, km = jax.random.split(key, 4)
    weight, bias = init_params(kw, n_h)
    c = jax.random.normal(kc, (B, N, n_h), jnp.float32)
    h_pl = jax.random.normal(kp, (B, N, n_h), jnp.float32)
    h_mi = jax.random.normal(km, (B, N, n_h), jnp.float32)

    logits = discriminator_mi_forward(c, h_pl, h_mi, weight, bias,
                                      force_pallas=True)
    logits = jax.block_until_ready(logits)

    sc1_ref = jnp.einsum('bni,ij,bnj->bn', h_pl, weight, c) + bias[0]
    sc2_ref = jnp.einsum('bni,ij,bnj->bn', h_mi, weight, c) + bias[0]
    ref = jnp.concatenate([sc1_ref, sc2_ref], axis=1)
    assert logits.shape == (B, 2 * N)
    assert jnp.allclose(logits, ref, atol=1e-4, rtol=1e-4)

    # --- natively-bf16 inputs (no wrapper cast; kernel accumulates in f32) ---
    logits_bf16 = jax.block_until_ready(discriminator_mi_forward(
        c.astype(jnp.bfloat16), h_pl.astype(jnp.bfloat16),
        h_mi.astype(jnp.bfloat16), weight, bias, force_pallas=True))
    assert jnp.allclose(logits_bf16, ref, atol=1e-1, rtol=1e-1)

    # --- tiny shapes (hidden=32) with s_bias: forced Pallas path and the
    #     auto-dispatch (plain einsum beats a kernel launch at this size) ---
    Bs, Ns, Hs = 2, 8, 32
    kw2, kc2, kp2, km2, kb1, kb2 = jax.random.split(jax.random.PRNGKey(1), 6)
    w_s, b_s = init_params(kw2, Hs)
    c_s = jax.random.normal(kc2, (Bs, Ns, Hs), jnp.float32)
    hp_s = jax.random.normal(kp2, (Bs, Ns, Hs), jnp.float32)
    hm_s = jax.random.normal(km2, (Bs, Ns, Hs), jnp.float32)
    sb1 = jax.random.normal(kb1, (Bs, Ns), jnp.float32)
    sb2 = jax.random.normal(kb2, (Bs, Ns), jnp.float32)

    ref_s = jnp.concatenate(
        [jnp.einsum('bni,ij,bnj->bn', hp_s, w_s, c_s) + b_s[0] + sb1,
         jnp.einsum('bni,ij,bnj->bn', hm_s, w_s, c_s) + b_s[0] + sb2], axis=1)

    out_pallas = jax.block_until_ready(discriminator_mi_forward(
        c_s, hp_s, hm_s, w_s, b_s, sb1, sb2, force_pallas=True))
    out_auto = jax.block_until_ready(discriminator_mi_forward(
        c_s, hp_s, hm_s, w_s, b_s, sb1, sb2))
    assert jnp.allclose(out_pallas, ref_s, atol=1e-4, rtol=1e-4)
    assert jnp.allclose(out_auto, ref_s, atol=1e-4, rtol=1e-4)

    print("KERNEL_OK")
</pallas_src>

<mosaic_0001>
module attributes {stable_mosaic.version = 11 : i64} {
  func.func @_bilinear_disc_kernel(%arg0: i32, %arg1: memref<1xf32, #tpu.memory_space<smem>>, %arg2: memref<256x128xf32, #tpu.memory_space<vmem>>, %arg3: memref<256x128xf32, #tpu.memory_space<vmem>>, %arg4: memref<256x128xf32, #tpu.memory_space<vmem>>, %arg5: memref<128x128xf32, #tpu.memory_space<vmem>>, %arg6: memref<256x2xf32, #tpu.memory_space<vmem>>) attributes {dimension_semantics = [#tpu.dimension_semantics<parallel>], iteration_bounds = array<i64: 2>, scalar_prefetch = 0 : i64, scratch_operands = 0 : i64, tpu.core_type = #tpu.core_type<tc>, window_params = [{transform_indices = @transform_0, window_bounds = array<i64: 1>}, {transform_indices = @transform_1, window_bounds = array<i64: 256, 128>}, {transform_indices = @transform_2, window_bounds = array<i64: 256, 128>}, {transform_indices = @transform_3, window_bounds = array<i64: 256, 128>}, {pipeline_mode = #tpu.pipeline_mode<synchronous>, transform_indices = @transform_4, window_bounds = array<i64: 128, 128>}, {transform_indices = @transform_5, window_bounds = array<i64: 256, 2>}]} {
    %c0 = arith.constant 0 : index
    %c0_0 = arith.constant 0 : index
    %0 = vector.load %arg2[%c0, %c0_0] : memref<256x128xf32, #tpu.memory_space<vmem>>, vector<256x128xf32>
    %c0_1 = arith.constant 0 : index
    %c0_2 = arith.constant 0 : index
    %1 = vector.load %arg5[%c0_1, %c0_2] : memref<128x128xf32, #tpu.memory_space<vmem>>, vector<128x128xf32>
    %cst = arith.constant dense<0.000000e+00> : vector<256x128xf32>
    %2 = tpu.matmul %0, %1, %cst {dimension_numbers = #tpu.dot_dimension_numbers<[1], [1], [0], [0], [0, 0, 1, 0], [], []>} : vector<256x128xf32>, vector<128x128xf32>, vector<256x128xf32> -> vector<256x128xf32>
    %c0_3 = arith.constant 0 : index
    %c0_4 = arith.constant 0 : index
    %3 = vector.load %arg3[%c0_3, %c0_4] : memref<256x128xf32, #tpu.memory_space<vmem>>, vector<256x128xf32>
    %c0_5 = arith.constant 0 : index
    %c0_6 = arith.constant 0 : index
    %4 = vector.load %arg4[%c0_5, %c0_6] : memref<256x128xf32, #tpu.memory_space<vmem>>, vector<256x128xf32>
    %cst_7 = arith.constant 1.000000e+00 : f32
    %5 = vector.broadcast %cst_7 : f32 to vector<128x1xf32>
    %6 = arith.mulf %3, %2 : vector<256x128xf32>
    %cst_8 = arith.constant dense<0.000000e+00> : vector<256x1xf32>
    %7 = tpu.matmul %6, %5, %cst_8 {dimension_numbers = #tpu.dot_dimension_numbers<[1], [0], [0], [1], [0, 0, 1, 1], [], []>} : vector<256x128xf32>, vector<128x1xf32>, vector<256x1xf32> -> vector<256x1xf32>
    %8 = arith.mulf %4, %2 : vector<256x128xf32>
    %cst_9 = arith.constant dense<0.000000e+00> : vector<256x1xf32>
    %9 = tpu.matmul %8, %5, %cst_9 {dimension_numbers = #tpu.dot_dimension_numbers<[1], [0], [0], [1], [0, 0, 1, 1], [], []>} : vector<256x128xf32>, vector<128x1xf32>, vector<256x1xf32> -> vector<256x1xf32>
    %c0_10 = arith.constant 0 : index
    %10 = memref.load %arg1[%c0_10] : memref<1xf32, #tpu.memory_space<smem>>
    %11 = tpu.concatenate %7, %9 in 1 : vector<256x1xf32>, vector<256x1xf32> -> vector<256x2xf32>
    %12 = vector.broadcast %10 : f32 to vector<256x2xf32>
    %13 = arith.addf %11, %12 : vector<256x2xf32>
    %c0_11 = arith.constant 0 : index
    %c0_12 = arith.constant 0 : index
    %14 = vector.load %arg6[%c0_11, %c0_12] : memref<256x2xf32, #tpu.memory_space<vmem>>, vector<256x2xf32>
    tpu.vector_store %arg6[%c0_11, %c0_12], %13 {strides = array<i32>} : memref<256x2xf32, #tpu.memory_space<vmem>>, vector<256x2xf32>,
    return
  }
  func.func @transform_0(%arg0: i32) -> i32 {
    %c0_i32 = arith.constant 0 : i32
    %c0_i32_0 = arith.constant 0 : i32
    return %c0_i32 : i32
  }
  func.func @transform_1(%arg0: i32) -> (i32, i32) {
    %c0_i32 = arith.constant 0 : i32
    %c0_i32_0 = arith.constant 0 : i32
    return %arg0, %c0_i32 : i32, i32
  }
  func.func @transform_2(%arg0: i32) -> (i32, i32) {
    %c0_i32 = arith.constant 0 : i32
    %c0_i32_0 = arith.constant 0 : i32
    return %arg0, %c0_i32 : i32, i32
  }
  func.func @transform_3(%arg0: i32) -> (i32, i32) {
    %c0_i32 = arith.constant 0 : i32
    %c0_i32_0 = arith.constant 0 : i32
    return %arg0, %c0_i32 : i32, i32
  }
  func.func @transform_4(%arg0: i32) -> (i32, i32) {
    %c0_i32 = arith.constant 0 : i32
    %c0_i32_0 = arith.constant 0 : i32
    %c0_i32_1 = arith.constant 0 : i32
    return %c0_i32, %c0_i32_0 : i32, i32
  }
  func.func @transform_5(%arg0: i32) -> (i32, i32) {
    %c0_i32 = arith.constant 0 : i32
    %c0_i32_0 = arith.constant 0 : i32
    return %arg0, %c0_i32 : i32, i32
  }
}

</mosaic_0001>

<llo_original>
// kernel: tpu_custom_call.1
$region0: #{tpu_custom_call.1}
  #allocation0 [shape = 'u32[]', space=smem, size = 0x4, offset = 0x4, fixed_abs, tag = 'smem constant byte address 0x4 - core index']
  #allocation1 [shape = 'u32[144,128]{1,0:T(1,128)}', space=vmem, size = 0x12000, scoped, tag = 'internal scratch']
  #allocation2 [shape = 'f32[1]{0:T(128)S(6)}', space=smem, size = 0x200, scoped, tag = 'scoped memory for tpu_custom_call.1']
  %s0 = inlined_call_operand.<no memory space> [shape: f32[1], index: 0, kind: input, shape index: {}]
  %s1 = inlined_call_operand.hbm [shape: f32[400,128], index: 1, kind: input, shape index: {}]
  %s2 = inlined_call_operand.hbm [shape: f32[400,128], index: 2, kind: input, shape index: {}]
  %s3 = inlined_call_operand.hbm [shape: f32[400,128], index: 3, kind: input, shape index: {}]
  %s4 = inlined_call_operand.hbm [shape: f32[128,128], index: 4, kind: input, shape index: {}]
  %s5 = inlined_call_operand.vmem [shape: f32[400,2], index: 5, kind: output, shape index: {}]
  %s6 = sld [smem:[#allocation0]]
  $region117: #{tpu_custom_call.1} parent=0
    _
  %s8 = ssub.s32 1, %s6
  %s9 = scalar_select 0, %s8, %s6
  %10 = sst [smem:[#allocation2]] %s0
  $region1: #{tpu_custom_call.1} parent=0
    #allocation3 [shape = 'u8[262144]{0}', space=vmem, size = 0x40000, scoped, tag = 'input window, operand 1']
    #allocation4 [shape = 's32[2]{0}', space=sflag, size = 0x8, scoped, tag = 'scoped memory for tpu_custom_call.1']
    #allocation5 [shape = 'u8[262144]{0}', space=vmem, size = 0x40000, scoped, tag = 'input window, operand 2']
    #allocation6 [shape = 's32[2]{0}', space=sflag, size = 0x8, scoped, tag = 'scoped memory for tpu_custom_call.1']
    #allocation7 [shape = 'u8[262144]{0}', space=vmem, size = 0x40000, scoped, tag = 'input window, operand 3']
    #allocation8 [shape = 'u8[65536]{0}', space=vmem, size = 0x10000, scoped, tag = 'input window, operand 4, single buffered']
    #allocation9 [shape = 's32[1]{0}', space=sflag, size = 0x4, scoped, tag = 'scoped memory for tpu_custom_call.1']
    #allocation10 [shape = 'u8[262144]{0}', space=vmem, size = 0x40000, scoped, tag = 'output window, operand 0']
    %11 = vsyncpa [#allocation4], 0
    %s12 = scalar_lea.sflag [#allocation4], 1
    %13 = vsyncpa %s12, 0
    %14 = vsyncpa [#allocation6], 0
    %s15 = scalar_lea.sflag [#allocation6], 1
    %16 = vsyncpa %s15, 0
    %17 = vsyncpa [#allocation9], 0
    loop: start=0, step=1, limit=4
    $region2: #{tpu_custom_call.1} parent=1 // loop_pre_header
      _
    $region3: #{tpu_custom_call.1} parent=1 // loop_header
      %s19 = sphi 0, %s23
      %p20 = scmp.ge.s32.totalorder %s19, 4
      %s27 = sphi 0, %s27
      %s29 = sphi 0, %s27
      %s30 = sphi 0, %s29
      %s44 = sphi 0, %s30
      %s50 = sphi 0, %s52
      %s53 = sphi 0, %s50
      %s54 = sphi 0, %s53
      %s70 = sphi 0, %s54
      %s76 = sphi 0, %s78
      %s79 = sphi 0, %s76
      %s80 = sphi 0, %s79
      %s96 = sphi 0, %s80
      %s102 = sphi 0, %s104
      %s105 = sphi 0, %s102
      %s106 = sphi 0, %s105
      %s122 = sphi 0, %s106
      %s126 = sphi 0, %s126
      %s128 = sphi 0, %s126
      %s129 = sphi 0, %s128
      %s143 = sphi 0, %s129
      %s149 = sphi 0, %s151
      %s152 = sphi 0, %s149
      %s153 = sphi 0, %s152
      %s169 = sphi 0, %s153
    $region4: #{tpu_custom_call.1} parent=1 // loop_header_branch
      %22 = sbr.rel (%p20) target = $region8
    $region5: #{tpu_custom_call.1} parent=1 // loop_body
      %s24 = ssub.s32 %s19, 1
      %s25 = ssub.s32 %s19, 2
      %s26 = sadd.s32 %s19, 1
      %s28 = sadd.s32 %s27, 1
      %p31 = scmp.eq.s32.totalorder %s19, 1
      %p32 = scmp.ne.s32.totalorder %s27, %s29
      %p33 = scmp.eq.s32.totalorder %s19, 0
      %p34 = por %p32, %p33
      %p35 = scmp.ne.s32.totalorder %s27, %s29
      %p36 = scmp.eq.s32.totalorder %s24, 1
      %p37 = por %p35, %p36
      %p38 = scmp.ne.s32.totalorder %s29, %s30
      %p39 = scmp.eq.s32.totalorder %s24, 0
      %p40 = por %p38, %p39
      %p41 = scmp.ne.s32.totalorder %s29, %s30
      %p42 = scmp.eq.s32.totalorder %s25, 1
      %p43 = por %p41, %p42
      %p45 = scmp.ne.s32.totalorder %s30, %s44
      %p46 = scmp.eq.s32.totalorder %s25, 0
      %p47 = por %p45, %p46
      %s48 = ssub.s32 %s19, %s26
      %p49 = scmp.eq.s32.totalorder %s48, 0
      %s51 = sadd.s32 %s50, 1
      %s52 = scalar_select %p49, %s50, %s51
      %p55 = pneg %p49
      %p56 = scmp.eq.s32.totalorder %s19, 1
      %p57 = por %p55, %p56
      %p58 = scmp.ne.s32.totalorder %s50, %s53
      %p59 = scmp.eq.s32.totalorder %s19, 0
      %p60 = por %p58, %p59
      %p61 = scmp.ne.s32.totalorder %s50, %s53
      %p62 = scmp.eq.s32.totalorder %s24, 1
      %p63 = por %p61, %p62
      %p64 = scmp.ne.s32.totalorder %s53, %s54
      %p65 = scmp.eq.s32.totalorder %s24, 0
      %p66 = por %p64, %p65
      %p67 = scmp.ne.s32.totalorder %s53, %s54
      %p68 = scmp.eq.s32.totalorder %s25, 1
      %p69 = por %p67, %p68
      %p71 = scmp.ne.s32.totalorder %s54, %s70
      %p72 = scmp.eq.s32.totalorder %s25, 0
      %p73 = por %p71, %p72
      %s74 = ssub.s32 %s19, %s26
      %p75 = scmp.eq.s32.totalorder %s74, 0
      %s77 = sadd.s32 %s76, 1
      %s78 = scalar_select %p75, %s76, %s77
      %p81 = pneg %p75
      %p82 = scmp.eq.s32.totalorder %s19, 1
      %p83 = por %p81, %p82
      %p84 = scmp.ne.s32.totalorder %s76, %s79
      %p85 = scmp.eq.s32.totalorder %s19, 0
      %p86 = por %p84, %p85
      %p87 = scmp.ne.s32.totalorder %s76, %s79
      %p88 = scmp.eq.s32.totalorder %s24, 1
      %p89 = por %p87, %p88
      %p90 = scmp.ne.s32.totalorder %s79, %s80
      %p91 = scmp.eq.s32.totalorder %s24, 0
      %p92 = por %p90, %p91
      %p93 = scmp.ne.s32.totalorder %s79, %s80
      %p94 = scmp.eq.s32.totalorder %s25, 1
      %p95 = por %p93, %p94
      %p97 = scmp.ne.s32.totalorder %s80, %s96
      %p98 = scmp.eq.s32.totalorder %s25, 0
      %p99 = por %p97, %p98
      %s100 = ssub.s32 %s19, %s26
      %p101 = scmp.eq.s32.totalorder %s100, 0
      %s103 = sadd.s32 %s102, 1
      %s104 = scalar_select %p101, %s102, %s103
      %p107 = pneg %p101
      %p108 = scmp.eq.s32.totalorder %s19, 1
      %p109 = por %p107, %p108
      %p110 = scmp.ne.s32.totalorder %s102, %s105
      %p111 = scmp.eq.s32.totalorder %s19, 0
      %p112 = por %p110, %p111
      %p113 = scmp.ne.s32.totalorder %s102, %s105
      %p114 = scmp.eq.s32.totalorder %s24, 1
      %p115 = por %p113, %p114
      %p116 = scmp.ne.s32.totalorder %s105, %s106
      %p117 = scmp.eq.s32.totalorder %s24, 0
      %p118 = por %p116, %p117
      %p119 = scmp.ne.s32.totalorder %s105, %s106
      %p120 = scmp.eq.s32.totalorder %s25, 1
      %p121 = por %p119, %p120
      %p123 = scmp.ne.s32.totalorder %s106, %s122
      %p124 = scmp.eq.s32.totalorder %s25, 0
      %p125 = por %p123, %p124
      %s127 = sadd.s32 %s126, 1
      %p130 = scmp.eq.s32.totalorder %s19, 1
      %p131 = scmp.ne.s32.totalorder %s126, %s128
      %p132 = scmp.eq.s32.totalorder %s19, 0
      %p133 = por %p131, %p132
      %p134 = scmp.ne.s32.totalorder %s126, %s128
      %p135 = scmp.eq.s32.totalorder %s24, 1
      %p136 = por %p134, %p135
      %p137 = scmp.ne.s32.totalorder %s128, %s129
      %p138 = scmp.eq.s32.totalorder %s24, 0
      %p139 = por %p137, %p138
      %p140 = scmp.ne.s32.totalorder %s128, %s129
      %p141 = scmp.eq.s32.totalorder %s25, 1
      %p142 = por %p140, %p141
      %p144 = scmp.ne.s32.totalorder %s129, %s143
      %p145 = scmp.eq.s32.totalorder %s25, 0
      %p146 = por %p144, %p145
      %s147 = ssub.s32 %s19, %s26
      %p148 = scmp.eq.s32.totalorder %s147, 0
      %s150 = sadd.s32 %s149, 1
      %s151 = scalar_select %p148, %s149, %s150
      %p154 = pneg %p148
      %p155 = scmp.eq.s32.totalorder %s19, 1
      %p156 = por %p154, %p155
      %p157 = scmp.ne.s32.totalorder %s149, %s152
      %p158 = scmp.eq.s32.totalorder %s19, 0
      %p159 = por %p157, %p158
      %p160 = scmp.ne.s32.totalorder %s149, %s152
      %p161 = scmp.eq.s32.totalorder %s24, 1
      %p162 = por %p160, %p161
      %p163 = scmp.ne.s32.totalorder %s152, %s153
      %p164 = scmp.eq.s32.totalorder %s24, 0
      %p165 = por %p163, %p164
      %p166 = scmp.ne.s32.totalorder %s152, %s153
      %p167 = scmp.eq.s32.totalorder %s25, 1
      %p168 = por %p166, %p167
      %p170 = scmp.ne.s32.totalorder %s153, %s169
      %p171 = scmp.eq.s32.totalorder %s25, 0
      %p172 = por %p170, %p171
      %p173 = scmp.le.s32.totalorder 1, %s19
      %p174 = scmp.lt.s32.totalorder %s19, 3
      %p175 = pnand %p173, %p174
      %p176 = pneg %p175
      // Predicated region
      $region9: #{tpu_custom_call.1} parent=5 // pred_check
        _
      $region10: #{tpu_custom_call.1} parent=5 // pred_check_branch
        %178 = sbr.rel (%p175) target = $region12
      $region11: #{tpu_custom_call.1} parent=5 // pred_region
        %s179 = ssub.s32 %s19, 1
        // Predicated region
        $region13: #{tpu_custom_call.1} parent=11 // pred_check
          %p180 = pneg %p40
        $region14: #{tpu_custom_call.1} parent=11 // pred_check_branch
          %182 = sbr.rel (%p180) target = $region16
        $region15: #{tpu_custom_call.1} parent=11 // pred_region
          _
        $region16: #{tpu_custom_call.1} parent=11 // pred_fallthru
          _
        // Predicated region
        $region17: #{tpu_custom_call.1} parent=11 // pred_check
          %p183 = pneg %p139
        $region18: #{tpu_custom_call.1} parent=11 // pred_check_branch
          %185 = sbr.rel (%p183) target = $region20
        $region19: #{tpu_custom_call.1} parent=11 // pred_region
          %s187 = ssub.s32 2048, 2048
          %188 = vsyncadd [#allocation9], %s187
          %s189 = sshll.u32 [#allocation8], 4
          %s190 = int_to_ptr.vmem [resolvable:$true] %s189
          %195 = dma.hbm_to_vmem [thread:$0]  %s4, 2048, %s190, [#allocation9], 128, 128, 8
        $region20: #{tpu_custom_call.1} parent=11 // pred_fallthru
          _
      $region12: #{tpu_custom_call.1} parent=5 // pred_fallthru
        _
      %p196 = scmp.lt.s32.totalorder %s19, 2
      // Predicated region
      $region21: #{tpu_custom_call.1} parent=5 // pred_check
        %p197 = pneg %p196
      $region22: #{tpu_custom_call.1} parent=5 // pred_check_branch
        %199 = sbr.rel (%p197) target = $region24
      $region23: #{tpu_custom_call.1} parent=5 // pred_region
        // Predicated region
        $region25: #{tpu_custom_call.1} parent=23 // pred_check
          %p200 = pneg %p60
        $region26: #{tpu_custom_call.1} parent=23 // pred_check_branch
          %202 = sbr.rel (%p200) target = $region28
        $region27: #{tpu_custom_call.1} parent=23 // pred_region
          %s203 = sand.u32 %s50, 1
          %s204 = scalar_lea.sflag [#allocation4], %s203
          %s205 = sand.u32 %s50, 1
          %s206 = smul.addr %s205, 256
          %s207 = scalar_lea.vmem [#allocation3], %s206
          %s208 = smul.u32 32, %s19
          %s209 = ssub.s32 50, %s208
          %p210 = scmp.lt.s32.totalorder %s209, 32
          %s211 = scalar_select %p210, %s209, 32
          %s212 = smul.u32 128, %s211
          %s214 = ssub.s32 4096, %s212
          %215 = vsyncadd %s204, %s214
          %p216 = scmp.ne.s32.totalorder 0, %s212
          %s217 = smul.addr %s208, 128
          %s218 = scalar_lea.hbm %s1, %s217
          %s219 = smul.u32 8, %s211
          %s220 = sshll.u32 %s207, 4
          %s221 = int_to_ptr.vmem [resolvable:$true] %s220
          %s222 = sshll.u32 %s219, 4
          %226 = dma.hbm_to_vmem [thread:$0]  (%p216), %s218, %s222, %s221, %s204, 128, 128, 8
        $region28: #{tpu_custom_call.1} parent=23 // pred_fallthru
          _
        // Predicated region
        $region29: #{tpu_custom_call.1} parent=23 // pred_check
          %p227 = pneg %p86
        $region30: #{tpu_custom_call.1} parent=23 // pred_check_branch
          %229 = sbr.rel (%p227) target = $region32
        $region31: #{tpu_custom_call.1} parent=23 // pred_region
          %s230 = sand.u32 %s19, 1
          %s231 = scalar_lea.sflag [#allocation6], %s230
          %s232 = sand.u32 %s76, 1
          %s233 = smul.addr %s232, 256
          %s234 = scalar_lea.vmem [#allocation5], %s233
          %s235 = smul.u32 32, %s19
          %s236 = ssub.s32 50, %s235
          %p237 = scmp.lt.s32.totalorder %s236, 32
          %s238 = scalar_select %p237, %s236, 32
          %s239 = smul.u32 128, %s238
          %s241 = ssub.s32 4096, %s239
          %242 = vsyncadd %s231, %s241
          %p243 = scmp.ne.s32.totalorder 0, %s239
          %s244 = smul.addr %s235, 128
          %s245 = scalar_lea.hbm %s2, %s244
          %s246 = smul.u32 8, %s238
          %s247 = sshll.u32 %s234, 4
          %s248 = int_to_ptr.vmem [resolvable:$true] %s247
          %s249 = sshll.u32 %s246, 4
          %253 = dma.hbm_to_vmem [thread:$0]  (%p243), %s245, %s249, %s248, %s231, 128, 128, 8
        $region32: #{tpu_custom_call.1} parent=23 // pred_fallthru
          _
        // Predicated region
        $region33: #{tpu_custom_call.1} parent=23 // pred_check
          %p254 = pneg %p112
        $region34: #{tpu_custom_call.1} parent=23 // pred_check_branch
          %256 = sbr.rel (%p254) target = $region36
        $region35: #{tpu_custom_call.1} parent=23 // pred_region
          %s257 = sand.u32 %s19, 1
          %s258 = scalar_lea.sflag [#allocation6], %s257
          %s259 = sand.u32 %s102, 1
          %s260 = smul.addr %s259, 256
          %s261 = scalar_lea.vmem [#allocation7], %s260
          %s262 = smul.u32 32, %s19
          %s263 = ssub.s32 50, %s262
          %p264 = scmp.lt.s32.totalorder %s263, 32
          %s265 = scalar_select %p264, %s263, 32
          %s266 = smul.u32 128, %s265
          %s268 = ssub.s32 4096, %s266
          %269 = vsyncadd %s258, %s268
          %p270 = scmp.ne.s32.totalorder 0, %s266
          %s271 = smul.addr %s262, 128
          %s272 = scalar_lea.hbm %s3, %s271
          %s273 = smul.u32 8, %s265
          %s274 = sshll.u32 %s261, 4
          %s275 = int_to_ptr.vmem [resolvable:$true] %s274
          %s276 = sshll.u32 %s273, 4
          %280 = dma.hbm_to_vmem [thread:$0]  (%p270), %s272, %s276, %s275, %s258, 128, 128, 8
        $region36: #{tpu_custom_call.1} parent=23 // pred_fallthru
          _
      $region24: #{tpu_custom_call.1} parent=5 // pred_fallthru
        _
      %p281 = scmp.le.s32.totalorder 1, %s19
      %p282 = scmp.lt.s32.totalorder %s19, 3
      %p283 = pnand %p281, %p282
      %p284 = pneg %p283
      // Predicated region
      $region37: #{tpu_custom_call.1} parent=5 // pred_check
        _
      $region38: #{tpu_custom_call.1} parent=5 // pred_check_branch
        %286 = sbr.rel (%p283) target = $region40
      $region39: #{tpu_custom_call.1} parent=5 // pred_region
        %s287 = ssub.s32 %s19, 1
        %s288 = sand.u32 %s53, 1
        %s289 = scalar_lea.sflag [#allocation4], %s288
        %s290 = sand.u32 %s53, 1
        %s291 = smul.addr %s290, 256
        %s292 = scalar_lea.vmem [#allocation3], %s291
        // Predicated region
        $region41: #{tpu_custom_call.1} parent=39 // pred_check
          %p293 = pneg %p66
        $region42: #{tpu_custom_call.1} parent=39 // pred_check_branch
          %295 = sbr.rel (%p293) target = $region44
        $region43: #{tpu_custom_call.1} parent=39 // pred_region
          %296 = dma.done %s289, 4096
        $region44: #{tpu_custom_call.1} parent=39 // pred_fallthru
          _
        %s297 = sand.u32 %s24, 1
        %s298 = scalar_lea.sflag [#allocation6], %s297
        %s299 = sand.u32 %s79, 1
        %s300 = smul.addr %s299, 256
        %s301 = scalar_lea.vmem [#allocation5], %s300
        // Predicated region
        $region45: #{tpu_custom_call.1} parent=39 // pred_check
          %p302 = pneg %p92
        $region46: #{tpu_custom_call.1} parent=39 // pred_check_branch
          %304 = sbr.rel (%p302) target = $region48
        $region47: #{tpu_custom_call.1} parent=39 // pred_region
          %305 = dma.done %s298, 4096
        $region48: #{tpu_custom_call.1} parent=39 // pred_fallthru
          _
        %s306 = sand.u32 %s24, 1
        %s307 = scalar_lea.sflag [#allocation6], %s306
        %s308 = sand.u32 %s105, 1
        %s309 = smul.addr %s308, 256
        %s310 = scalar_lea.vmem [#allocation7], %s309
        // Predicated region
        $region49: #{tpu_custom_call.1} parent=39 // pred_check
          %p311 = pneg %p118
        $region50: #{tpu_custom_call.1} parent=39 // pred_check_branch
          %313 = sbr.rel (%p311) target = $region52
        $region51: #{tpu_custom_call.1} parent=39 // pred_region
          %314 = dma.done %s307, 4096
        $region52: #{tpu_custom_call.1} parent=39 // pred_fallthru
          _
        // Predicated region
        $region53: #{tpu_custom_call.1} parent=39 // pred_check
          %p315 = pneg %p139
        $region54: #{tpu_custom_call.1} parent=39 // pred_check_branch
          %317 = sbr.rel (%p315) target = $region56
        $region55: #{tpu_custom_call.1} parent=39 // pred_region
          %318 = dma.done [#allocation9], 2048
        $region56: #{tpu_custom_call.1} parent=39 // pred_fallthru
          _
        %p319 = pneg %p40
        %p320 = pneg %p37
        %s321 = sand.u32 %s53, 1
        %s322 = scalar_lea.sflag [#allocation4], %s321
        %s323 = sand.u32 %s53, 1
        %s324 = smul.addr %s323, 256
        %s325 = scalar_lea.vmem [#allocation3], %s324
        %p326 = pneg %p66
        %p327 = pneg %p63
        %s328 = sand.u32 %s24, 1
        %s329 = scalar_lea.sflag [#allocation6], %s328
        %s330 = sand.u32 %s79, 1
        %s331 = smul.addr %s330, 256
        %s332 = scalar_lea.vmem [#allocation5], %s331
        %p333 = pneg %p92
        %p334 = pneg %p89
        %s335 = sand.u32 %s24, 1
        %s336 = scalar_lea.sflag [#allocation6], %s335
        %s337 = sand.u32 %s105, 1
        %s338 = smul.addr %s337, 256
        %s339 = scalar_lea.vmem [#allocation7], %s338
        %p340 = pneg %p118
        %p341 = pneg %p115
        %p342 = pneg %p139
        %p343 = pneg %p136
        %p344 = pneg %p165
        %p345 = pneg %p162
        %s346 = sand.u32 %s152, 1
        %s347 = sand.u32 %s152, 1
        %s348 = smul.addr %s347, 256
        %s349 = scalar_lea.vmem [#allocation10], %s348
        %s350 = smul.u32 32, %s24
        %s351 = ssub.s32 50, %s350
        %p352 = scmp.lt.s32.totalorder %s351, 32
        %s353 = scalar_select %p352, %s351, 32
        %s354 = smul.u32 128, %s353
        %s355 = smul.u32 32, %s24
        %s356 = ssub.s32 50, %s355
        %p357 = scmp.lt.s32.totalorder %s356, 32
        %s358 = scalar_select %p357, %s356, 32
        %s359 = smul.u32 128, %s358
        %s360 = smul.u32 32, %s24
        %s361 = ssub.s32 50, %s360
        %p362 = scmp.lt.s32.totalorder %s361, 32
        %s363 = scalar_select %p362, %s361, 32
        %s364 = smul.u32 128, %s363
        %s365 = smul.u32 32, %s24
        %s366 = ssub.s32 50, %s365
        %p367 = scmp.lt.s32.totalorder %s366, 32
        %s368 = scalar_select %p367, %s366, 32
        %s369 = smul.u32 128, %s368
        %v370 = vld [vmem:[%s292] sm:$0xff]
        %v371 = vld [vmem:[%s292 + $0x8] sm:$0xff]
        %v372 = vld [vmem:[%s292 + $0x10] sm:$0xff]
        %v373 = vld [vmem:[%s292 + $0x18] sm:$0xff]
        %v374 = vld [vmem:[%s292 + $0x20] sm:$0xff]
        %v375 = vld [vmem:[%s292 + $0x28] sm:$0xff]
        %v376 = vld [vmem:[%s292 + $0x30] sm:$0xff]
        %v377 = vld [vmem:[%s292 + $0x38] sm:$0xff]
        %v378 = vld [vmem:[%s292 + $0x40] sm:$0xff]
        %v379 = vld [vmem:[%s292 + $0x48] sm:$0xff]
        %v380 = vld [vmem:[%s292 + $0x50] sm:$0xff]
        %v381 = vld [vmem:[%s292 + $0x58] sm:$0xff]
        %v382 = vld [vmem:[%s292 + $0x60] sm:$0xff]
        %v383 = vld [vmem:[%s292 + $0x68] sm:$0xff]
        %v384 = vld [vmem:[%s292 + $0x70] sm:$0xff]
        %v385 = vld [vmem:[%s292 + $0x78] sm:$0xff]
        %v386 = vld [vmem:[%s292 + $0x80] sm:$0xff]
        %v387 = vld [vmem:[%s292 + $0x88] sm:$0xff]
        %v388 = vld [vmem:[%s292 + $0x90] sm:$0xff]
        %v389 = vld [vmem:[%s292 + $0x98] sm:$0xff]
        %v390 = vld [vmem:[%s292 + $0xa0] sm:$0xff]
        %v391 = vld [vmem:[%s292 + $0xa8] sm:$0xff]
        %v392 = vld [vmem:[%s292 + $0xb0] sm:$0xff]
        %v393 = vld [vmem:[%s292 + $0xb8] sm:$0xff]
        %v394 = vld [vmem:[%s292 + $0xc0] sm:$0xff]
        %v395 = vld [vmem:[%s292 + $0xc8] sm:$0xff]
        %v396 = vld [vmem:[%s292 + $0xd0] sm:$0xff]
        %v397 = vld [vmem:[%s292 + $0xd8] sm:$0xff]
        %v398 = vld [vmem:[%s292 + $0xe0] sm:$0xff]
        %v399 = vld [vmem:[%s292 + $0xe8] sm:$0xff]
        %v400 = vld [vmem:[%s292 + $0xf0] sm:$0xff]
        %v401 = vld [vmem:[%s292 + $0xf8] sm:$0xff]
        %v402 = vld [vmem:[#allocation8] sm:$0xff]
        %v403 = vld [vmem:[#allocation8 + $0x8] sm:$0xff]
        %v404 = vld [vmem:[#allocation8 + $0x10] sm:$0xff]
        %v405 = vld [vmem:[#allocation8 + $0x18] sm:$0xff]
        %v406 = vld [vmem:[#allocation8 + $0x20] sm:$0xff]
        %v407 = vld [vmem:[#allocation8 + $0x28] sm:$0xff]
        %v408 = vld [vmem:[#allocation8 + $0x30] sm:$0xff]
        %v409 = vld [vmem:[#allocation8 + $0x38] sm:$0xff]
        %v410 = vld [vmem:[#allocation8 + $0x40] sm:$0xff]
        %v411 = vld [vmem:[#allocation8 + $0x48] sm:$0xff]
        %v412 = vld [vmem:[#allocation8 + $0x50] sm:$0xff]
        %v413 = vld [vmem:[#allocation8 + $0x58] sm:$0xff]
        %v414 = vld [vmem:[#allocation8 + $0x60] sm:$0xff]
        %v415 = vld [vmem:[#allocation8 + $0x68] sm:$0xff]
        %v416 = vld [vmem:[#allocation8 + $0x70] sm:$0xff]
        %v417 = vld [vmem:[#allocation8 + $0x78] sm:$0xff]
        %418 = vmatprep.subr.mxu0 0.0
        %419 = vmatpush1.xpose.msra.mxu0 %v417
        %420 = vmatprep.subr.mxu0 0.0
        %421 = vmatpush1.xpose.msra.mxu0 %v416
        %422 = vmatprep.subr.mxu0 0.0
        %423 = vmatpush1.xpose.msra.mxu0 %v415
        %424 = vmatprep.subr.mxu0 0.0
        %425 = vmatpush1.xpose.msra.mxu0 %v414
        %426 = vmatprep.subr.mxu0 0.0
        %427 = vmatpush1.xpose.msra.mxu0 %v413
        %428 = vmatprep.subr.mxu0 0.0
        %429 = vmatpush1.xpose.msra.mxu0 %v412
        %430 = vmatprep.subr.mxu0 0.0
        %431 = vmatpush1.xpose.msra.mxu0 %v411
        %432 = vmatprep.subr.mxu0 0.0
        %433 = vmatpush1.xpose.msra.mxu0 %v410
        %434 = vmatprep.subr.mxu0 0.0
        %435 = vmatpush1.xpose.msra.mxu0 %v409
        %436 = vmatprep.subr.mxu0 0.0
        %437 = vmatpush1.xpose.msra.mxu0 %v408
        %438 = vmatprep.subr.mxu0 0.0
        %439 = vmatpush1.xpose.msra.mxu0 %v407
        %440 = vmatprep.subr.mxu0 0.0
        %441 = vmatpush1.xpose.msra.mxu0 %v406
        %442 = vmatprep.subr.mxu0 0.0
        %443 = vmatpush1.xpose.msra.mxu0 %v405
        %444 = vmatprep.subr.mxu0 0.0
        %445 = vmatpush1.xpose.msra.mxu0 %v404
        %446 = vmatprep.subr.mxu0 0.0
        %447 = vmatpush1.xpose.msra.mxu0 %v403
        %448 = vmatprep.subr.mxu0 0.0
        %449 = vmatpush1.xpose.msra.mxu0 %v402
        %450 = vmatprep.subr.mxu0 0.0
        %451 = vmatpush2.xpose.msra.mxu0 0.0
        %452 = vmatprep.subr.mxu0 0.0
        %453 = vmatpush2.xpose.msra.mxu0 0.0
        %454 = vmatprep.subr.mxu0 0.0
        %455 = vmatpush2.xpose.msra.mxu0 0.0
        %456 = vmatprep.subr.mxu0 0.0
        %457 = vmatpush2.xpose.msra.mxu0 0.0
        %458 = vmatprep.subr.mxu0 0.0
        %459 = vmatpush2.xpose.msra.mxu0 0.0
        %460 = vmatprep.subr.mxu0 0.0
        %461 = vmatpush2.xpose.msra.mxu0 0.0
        %462 = vmatprep.subr.mxu0 0.0
        %463 = vmatpush2.xpose.msra.mxu0 0.0
        %464 = vmatprep.subr.mxu0 0.0
        %465 = vmatpush2.xpose.msra.mxu0 0.0
        %466 = vmatprep.subr.mxu0 0.0
        %467 = vmatpush2.xpose.msra.mxu0 0.0
        %468 = vmatprep.subr.mxu0 0.0
        %469 = vmatpush2.xpose.msra.mxu0 0.0
        %470 = vmatprep.subr.mxu0 0.0
        %471 = vmatpush2.xpose.msra.mxu0 0.0
        %472 = vmatprep.subr.mxu0 0.0
        %473 = vmatpush2.xpose.msra.mxu0 0.0
        %474 = vmatprep.subr.mxu0 0.0
        %475 = vmatpush2.xpose.msra.mxu0 0.0
        %476 = vmatprep.subr.mxu0 0.0
        %477 = vmatpush2.xpose.msra.mxu0 0.0
        %478 = vmatprep.subr.mxu0 0.0
        %479 = vmatpush2.xpose.msra.mxu0 0.0
        %480 = vmatprep.subr.mxu0 0.0
        %481 = vmatpush2.xpose.msra.mxu0 0.0
        %482 = vmatprep.mubr.f32.mxu0 0.0
        %483 = vmatmul.mubr.f32.gmra.mxu0 %v370
        %v484 = vpop.f32.mrf.mxu0
        %v485 = vadd.f32 0.0, %v484
        %v486 = vpop.f32.mrf.mxu0
        %487 = vmatprep.mubr.f32.mxu0 0.0
        %488 = vmatmul.mubr.f32.gmra.mxu0 %v371
        %v489 = vpop.f32.mrf.mxu0
        %v490 = vadd.f32 0.0, %v489
        %v491 = vpop.f32.mrf.mxu0
        %492 = vmatprep.mubr.f32.mxu0 0.0
        %493 = vmatmul.mubr.f32.gmra.mxu0 %v372
        %v494 = vpop.f32.mrf.mxu0
        %v495 = vadd.f32 0.0, %v494
        %v496 = vpop.f32.mrf.mxu0
        %497 = vmatprep.mubr.f32.mxu0 0.0
        %498 = vmatmul.mubr.f32.gmra.mxu0 %v373
        %v499 = vpop.f32.mrf.mxu0
        %v500 = vadd.f32 0.0, %v499
        %v501 = vpop.f32.mrf.mxu0
        %502 = vmatprep.mubr.f32.mxu0 0.0
        %503 = vmatmul.mubr.f32.gmra.mxu0 %v374
        %v504 = vpop.f32.mrf.mxu0
        %v505 = vadd.f32 0.0, %v504
        %v506 = vpop.f32.mrf.mxu0
        %507 = vmatprep.mubr.f32.mxu0 0.0
        %508 = vmatmul.mubr.f32.gmra.mxu0 %v375
        %v509 = vpop.f32.mrf.mxu0
        %v510 = vadd.f32 0.0, %v509
        %v511 = vpop.f32.mrf.mxu0
        %512 = vmatprep.mubr.f32.mxu0 0.0
        %513 = vmatmul.mubr.f32.gmra.mxu0 %v376
        %v514 = vpop.f32.mrf.mxu0
        %v515 = vadd.f32 0.0, %v514
        %v516 = vpop.f32.mrf.mxu0
        %517 = vmatprep.mubr.f32.mxu0 0.0
        %518 = vmatmul.mubr.f32.gmra.mxu0 %v377
        %v519 = vpop.f32.mrf.mxu0
        %v520 = vadd.f32 0.0, %v519
        %v521 = vpop.f32.mrf.mxu0
        %522 = vmatprep.mubr.f32.mxu0 0.0
        %523 = vmatmul.mubr.f32.gmra.mxu0 %v378
        %v524 = vpop.f32.mrf.mxu0
        %v525 = vadd.f32 0.0, %v524
        %v526 = vpop.f32.mrf.mxu0
        %527 = vmatprep.mubr.f32.mxu0 0.0
        %528 = vmatmul.mubr.f32.gmra.mxu0 %v379
        %v529 = vpop.f32.mrf.mxu0
        %v530 = vadd.f32 0.0, %v529
        %v531 = vpop.f32.mrf.mxu0
        %532 = vmatprep.mubr.f32.mxu0 0.0
        %533 = vmatmul.mubr.f32.gmra.mxu0 %v380
        %v534 = vpop.f32.mrf.mxu0
        %v535 = vadd.f32 0.0, %v534
        %v536 = vpop.f32.mrf.mxu0
        %537 = vmatprep.mubr.f32.mxu0 0.0
        %538 = vmatmul.mubr.f32.gmra.mxu0 %v381
        %v539 = vpop.f32.mrf.mxu0
        %v540 = vadd.f32 0.0, %v539
        %v541 = vpop.f32.mrf.mxu0
        %542 = vmatprep.mubr.f32.mxu0 0.0
        %543 = vmatmul.mubr.f32.gmra.mxu0 %v382
        %v544 = vpop.f32.mrf.mxu0
        %v545 = vadd.f32 0.0, %v544
        %v546 = vpop.f32.mrf.mxu0
        %547 = vmatprep.mubr.f32.mxu0 0.0
        %548 = vmatmul.mubr.f32.gmra.mxu0 %v383
        %v549 = vpop.f32.mrf.mxu0
        %v550 = vadd.f32 0.0, %v549
        %v551 = vpop.f32.mrf.mxu0
        %552 = vmatprep.mubr.f32.mxu0 0.0
        %553 = vmatmul.mubr.f32.gmra.mxu0 %v384
        %v554 = vpop.f32.mrf.mxu0
        %v555 = vadd.f32 0.0, %v554
        %v556 = vpop.f32.mrf.mxu0
        %557 = vmatprep.mubr.f32.mxu0 0.0
        %558 = vmatmul.mubr.f32.gmra.mxu0 %v385
        %v559 = vpop.f32.mrf.mxu0
        %v560 = vadd.f32 0.0, %v559
        %v561 = vpop.f32.mrf.mxu0
        %562 = vmatprep.mubr.f32.mxu0 0.0
        %563 = vmatmul.mubr.f32.gmra.mxu0 %v386
        %v564 = vpop.f32.mrf.mxu0
        %v565 = vadd.f32 0.0, %v564
        %v566 = vpop.f32.mrf.mxu0
        %567 = vmatprep.mubr.f32.mxu0 0.0
        %568 = vmatmul.mubr.f32.gmra.mxu0 %v387
        %v569 = vpop.f32.mrf.mxu0
        %v570 = vadd.f32 0.0, %v569
        %v571 = vpop.f32.mrf.mxu0
        %572 = vmatprep.mubr.f32.mxu0 0.0
        %573 = vmatmul.mubr.f32.gmra.mxu0 %v388
        %v574 = vpop.f32.mrf.mxu0
        %v575 = vadd.f32 0.0, %v574
        %v576 = vpop.f32.mrf.mxu0
        %577 = vmatprep.mubr.f32.mxu0 0.0
        %578 = vmatmul.mubr.f32.gmra.mxu0 %v389
        %v579 = vpop.f32.mrf.mxu0
        %v580 = vadd.f32 0.0, %v579
        %v581 = vpop.f32.mrf.mxu0
        %582 = vmatprep.mubr.f32.mxu0 0.0
        %583 = vmatmul.mubr.f32.gmra.mxu0 %v390
        %v584 = vpop.f32.mrf.mxu0
        %v585 = vadd.f32 0.0, %v584
        %v586 = vpop.f32.mrf.mxu0
        %587 = vmatprep.mubr.f32.mxu0 0.0
        %588 = vmatmul.mubr.f32.gmra.mxu0 %v391
        %v589 = vpop.f32.mrf.mxu0
        %v590 = vadd.f32 0.0, %v589
        %v591 = vpop.f32.mrf.mxu0
        %592 = vmatprep.mubr.f32.mxu0 0.0
        %593 = vmatmul.mubr.f32.gmra.mxu0 %v392
        %v594 = vpop.f32.mrf.mxu0
        %v595 = vadd.f32 0.0, %v594
        %v596 = vpop.f32.mrf.mxu0
        %597 = vmatprep.mubr.f32.mxu0 0.0
        %598 = vmatmul.mubr.f32.gmra.mxu0 %v393
        %v599 = vpop.f32.mrf.mxu0
        %v600 = vadd.f32 0.0, %v599
        %v601 = vpop.f32.mrf.mxu0
        %602 = vmatprep.mubr.f32.mxu0 0.0
        %603 = vmatmul.mubr.f32.gmra.mxu0 %v394
        %v604 = vpop.f32.mrf.mxu0
        %v605 = vadd.f32 0.0, %v604
        %v606 = vpop.f32.mrf.mxu0
        %607 = vmatprep.mubr.f32.mxu0 0.0
        %608 = vmatmul.mubr.f32.gmra.mxu0 %v395
        %v609 = vpop.f32.mrf.mxu0
        %v610 = vadd.f32 0.0, %v609
        %v611 = vpop.f32.mrf.mxu0
        %612 = vmatprep.mubr.f32.mxu0 0.0
        %613 = vmatmul.mubr.f32.gmra.mxu0 %v396
        %v614 = vpop.f32.mrf.mxu0
        %v615 = vadd.f32 0.0, %v614
        %v616 = vpop.f32.mrf.mxu0
        %617 = vmatprep.mubr.f32.mxu0 0.0
        %618 = vmatmul.mubr.f32.gmra.mxu0 %v397
        %v619 = vpop.f32.mrf.mxu0
        %v620 = vadd.f32 0.0, %v619
        %v621 = vpop.f32.mrf.mxu0
        %622 = vmatprep.mubr.f32.mxu0 0.0
        %623 = vmatmul.mubr.f32.gmra.mxu0 %v398
        %v624 = vpop.f32.mrf.mxu0
        %v625 = vadd.f32 0.0, %v624
        %v626 = vpop.f32.mrf.mxu0
        %627 = vmatprep.mubr.f32.mxu0 0.0
        %628 = vmatmul.mubr.f32.gmra.mxu0 %v399
        %v629 = vpop.f32.mrf.mxu0
        %v630 = vadd.f32 0.0, %v629
        %v631 = vpop.f32.mrf.mxu0
        %632 = vmatprep.mubr.f32.mxu0 0.0
        %633 = vmatmul.mubr.f32.gmra.mxu0 %v400
        %v634 = vpop.f32.mrf.mxu0
        %v635 = vadd.f32 0.0, %v634
        %v636 = vpop.f32.mrf.mxu0
        %637 = vmatprep.mubr.f32.mxu0 0.0
        %638 = vmatmul.mubr.f32.gmra.mxu0 %v401
        %v639 = vpop.f32.mrf.mxu0
        %v640 = vadd.f32 0.0, %v639
        %v641 = vpop.f32.mrf.mxu0
        %642 = vdwg.mxu0
        %v643 = vld [vmem:[%s301] sm:$0xff]
        %v644 = vld [vmem:[%s301 + $0x8] sm:$0xff]
        %v645 = vld [vmem:[%s301 + $0x10] sm:$0xff]
        %v646 = vld [vmem:[%s301 + $0x18] sm:$0xff]
        %v647 = vld [vmem:[%s301 + $0x20] sm:$0xff]
        %v648 = vld [vmem:[%s301 + $0x28] sm:$0xff]
        %v649 = vld [vmem:[%s301 + $0x30] sm:$0xff]
        %v650 = vld [vmem:[%s301 + $0x38] sm:$0xff]
        %v651 = vld [vmem:[%s301 + $0x40] sm:$0xff]
        %v652 = vld [vmem:[%s301 + $0x48] sm:$0xff]
        %v653 = vld [vmem:[%s301 + $0x50] sm:$0xff]
        %v654 = vld [vmem:[%s301 + $0x58] sm:$0xff]
        %v655 = vld [vmem:[%s301 + $0x60] sm:$0xff]
        %v656 = vld [vmem:[%s301 + $0x68] sm:$0xff]
        %v657 = vld [vmem:[%s301 + $0x70] sm:$0xff]
        %v658 = vld [vmem:[%s301 + $0x78] sm:$0xff]
        %v659 = vld [vmem:[%s301 + $0x80] sm:$0xff]
        %v660 = vld [vmem:[%s301 + $0x88] sm:$0xff]
        %v661 = vld [vmem:[%s301 + $0x90] sm:$0xff]
        %v662 = vld [vmem:[%s301 + $0x98] sm:$0xff]
        %v663 = vld [vmem:[%s301 + $0xa0] sm:$0xff]
        %v664 = vld [vmem:[%s301 + $0xa8] sm:$0xff]
        %v665 = vld [vmem:[%s301 + $0xb0] sm:$0xff]
        %v666 = vld [vmem:[%s301 + $0xb8] sm:$0xff]
        %v667 = vld [vmem:[%s301 + $0xc0] sm:$0xff]
        %v668 = vld [vmem:[%s301 + $0xc8] sm:$0xff]
        %v669 = vld [vmem:[%s301 + $0xd0] sm:$0xff]
        %v670 = vld [vmem:[%s301 + $0xd8] sm:$0xff]
        %v671 = vld [vmem:[%s301 + $0xe0] sm:$0xff]
        %v672 = vld [vmem:[%s301 + $0xe8] sm:$0xff]
        %v673 = vld [vmem:[%s301 + $0xf0] sm:$0xff]
        %v674 = vld [vmem:[%s301 + $0xf8] sm:$0xff]
        %v675 = vld [vmem:[%s310] sm:$0xff]
        %v676 = vld [vmem:[%s310 + $0x8] sm:$0xff]
        %v677 = vld [vmem:[%s310 + $0x10] sm:$0xff]
        %v678 = vld [vmem:[%s310 + $0x18] sm:$0xff]
        %v679 = vld [vmem:[%s310 + $0x20] sm:$0xff]
        %v680 = vld [vmem:[%s310 + $0x28] sm:$0xff]
        %v681 = vld [vmem:[%s310 + $0x30] sm:$0xff]
        %v682 = vld [vmem:[%s310 + $0x38] sm:$0xff]
        %v683 = vld [vmem:[%s310 + $0x40] sm:$0xff]
        %v684 = vld [vmem:[%s310 + $0x48] sm:$0xff]
        %v685 = vld [vmem:[%s310 + $0x50] sm:$0xff]
        %v686 = vld [vmem:[%s310 + $0x58] sm:$0xff]
        %v687 = vld [vmem:[%s310 + $0x60] sm:$0xff]
        %v688 = vld [vmem:[%s310 + $0x68] sm:$0xff]
        %v689 = vld [vmem:[%s310 + $0x70] sm:$0xff]
        %v690 = vld [vmem:[%s310 + $0x78] sm:$0xff]
        %v691 = vld [vmem:[%s310 + $0x80] sm:$0xff]
        %v692 = vld [vmem:[%s310 + $0x88] sm:$0xff]
        %v693 = vld [vmem:[%s310 + $0x90] sm:$0xff]
        %v694 = vld [vmem:[%s310 + $0x98] sm:$0xff]
        %v695 = vld [vmem:[%s310 + $0xa0] sm:$0xff]
        %v696 = vld [vmem:[%s310 + $0xa8] sm:$0xff]
        %v697 = vld [vmem:[%s310 + $0xb0] sm:$0xff]
        %v698 = vld [vmem:[%s310 + $0xb8] sm:$0xff]
        %v699 = vld [vmem:[%s310 + $0xc0] sm:$0xff]
        %v700 = vld [vmem:[%s310 + $0xc8] sm:$0xff]
        %v701 = vld [vmem:[%s310 + $0xd0] sm:$0xff]
        %v702 = vld [vmem:[%s310 + $0xd8] sm:$0xff]
        %v703 = vld [vmem:[%s310 + $0xe0] sm:$0xff]
        %v704 = vld [vmem:[%s310 + $0xe8] sm:$0xff]
        %v705 = vld [vmem:[%s310 + $0xf0] sm:$0xff]
        %v706 = vld [vmem:[%s310 + $0xf8] sm:$0xff]
        %v707 = vmul.f32 %v643, %v485
        %v708 = vmul.f32 %v644, %v490
        %v709 = vmul.f32 %v645, %v495
        %v710 = vmul.f32 %v646, %v500
        %v711 = vmul.f32 %v647, %v505
        %v712 = vmul.f32 %v648, %v510
        %v713 = vmul.f32 %v649, %v515
        %v714 = vmul.f32 %v650, %v520
        %v715 = vmul.f32 %v651, %v525
        %v716 = vmul.f32 %v652, %v530
        %v717 = vmul.f32 %v653, %v535
        %v718 = vmul.f32 %v654, %v540
        %v719 = vmul.f32 %v655, %v545
        %v720 = vmul.f32 %v656, %v550
        %v721 = vmul.f32 %v657, %v555
        %v722 = vmul.f32 %v658, %v560
        %v723 = vmul.f32 %v659, %v565
        %v724 = vmul.f32 %v660, %v570
        %v725 = vmul.f32 %v661, %v575
        %v726 = vmul.f32 %v662, %v580
        %v727 = vmul.f32 %v663, %v585
        %v728 = vmul.f32 %v664, %v590
        %v729 = vmul.f32 %v665, %v595
        %v730 = vmul.f32 %v666, %v600
        %v731 = vmul.f32 %v667, %v605
        %v732 = vmul.f32 %v668, %v610
        %v733 = vmul.f32 %v669, %v615
        %v734 = vmul.f32 %v670, %v620
        %v735 = vmul.f32 %v671, %v625
        %v736 = vmul.f32 %v672, %v630
        %v737 = vmul.f32 %v673, %v635
        %v738 = vmul.f32 %v674, %v640
        %739 = vmatprep.subr.mxu0 0.0
        %740 = vmatpush1.msra.mxu0 1.0
        %741 = vmatprep.subr.mxu0 0.0
        %742 = vmatpush1.msra.mxu0 1.0
        %743 = vmatprep.subr.mxu0 0.0
        %744 = vmatpush1.msra.mxu0 1.0
        %745 = vmatprep.subr.mxu0 0.0
        %746 = vmatpush1.msra.mxu0 1.0
        %747 = vmatprep.subr.mxu0 0.0
        %748 = vmatpush1.msra.mxu0 1.0
        %749 = vmatprep.subr.mxu0 0.0
        %750 = vmatpush1.msra.mxu0 1.0
        %751 = vmatprep.subr.mxu0 0.0
        %752 = vmatpush1.msra.mxu0 1.0
        %753 = vmatprep.subr.mxu0 0.0
        %754 = vmatpush1.msra.mxu0 1.0
        %755 = vmatprep.subr.mxu0 0.0
        %756 = vmatpush1.msra.mxu0 1.0
        %757 = vmatprep.subr.mxu0 0.0
        %758 = vmatpush1.msra.mxu0 1.0
        %759 = vmatprep.subr.mxu0 0.0
        %760 = vmatpush1.msra.mxu0 1.0
        %761 = vmatprep.subr.mxu0 0.0
        %762 = vmatpush1.msra.mxu0 1.0
        %763 = vmatprep.subr.mxu0 0.0
        %764 = vmatpush1.msra.mxu0 1.0
        %765 = vmatprep.subr.mxu0 0.0
        %766 = vmatpush1.msra.mxu0 1.0
        %767 = vmatprep.subr.mxu0 0.0
        %768 = vmatpush1.msra.mxu0 1.0
        %769 = vmatprep.subr.mxu0 0.0
        %770 = vmatpush1.msra.mxu0 1.0
        %771 = vmatprep.subr.mxu0 0.0
        %772 = vmatpush2.msra.mxu0 0.0
        %773 = vmatprep.subr.mxu0 0.0
        %774 = vmatpush2.msra.mxu0 0.0
        %775 = vmatprep.subr.mxu0 0.0
        %776 = vmatpush2.msra.mxu0 0.0
        %777 = vmatprep.subr.mxu0 0.0
        %778 = vmatpush2.msra.mxu0 0.0
        %779 = vmatprep.subr.mxu0 0.0
        %780 = vmatpush2.msra.mxu0 0.0
        %781 = vmatprep.subr.mxu0 0.0
        %782 = vmatpush2.msra.mxu0 0.0
        %783 = vmatprep.subr.mxu0 0.0
        %784 = vmatpush2.msra.mxu0 0.0
        %785 = vmatprep.subr.mxu0 0.0
        %786 = vmatpush2.msra.mxu0 0.0
        %787 = vmatprep.subr.mxu0 0.0
        %788 = vmatpush2.msra.mxu0 0.0
        %789 = vmatprep.subr.mxu0 0.0
        %790 = vmatpush2.msra.mxu0 0.0
        %791 = vmatprep.subr.mxu0 0.0
        %792 = vmatpush2.msra.mxu0 0.0
        %793 = vmatprep.subr.mxu0 0.0
        %794 = vmatpush2.msra.mxu0 0.0
        %795 = vmatprep.subr.mxu0 0.0
        %796 = vmatpush2.msra.mxu0 0.0
        %797 = vmatprep.subr.mxu0 0.0
        %798 = vmatpush2.msra.mxu0 0.0
        %799 = vmatprep.subr.mxu0 0.0
        %800 = vmatpush2.msra.mxu0 0.0
        %801 = vmatprep.subr.mxu0 0.0
        %802 = vmatpush2.msra.mxu0 0.0
        %803 = vmatprep.mubr.f32.mxu0 0.0
        %804 = vmatmul.mubr.f32.gmra.mxu0 %v707
        %v805 = vpop.f32.mrf.mxu0
        %v806 = vadd.f32 0.0, %v805
        %v807 = vpop.f32.mrf.mxu0
        %808 = vmatprep.mubr.f32.mxu0 0.0
        %809 = vmatmul.mubr.f32.gmra.mxu0 %v708
        %v810 = vpop.f32.mrf.mxu0
        %v811 = vadd.f32 0.0, %v810
        %v812 = vpop.f32.mrf.mxu0
        %813 = vmatprep.mubr.f32.mxu0 0.0
        %814 = vmatmul.mubr.f32.gmra.mxu0 %v709
        %v815 = vpop.f32.mrf.mxu0
        %v816 = vadd.f32 0.0, %v815
        %v817 = vpop.f32.mrf.mxu0
        %818 = vmatprep.mubr.f32.mxu0 0.0
        %819 = vmatmul.mubr.f32.gmra.mxu0 %v710
        %v820 = vpop.f32.mrf.mxu0
        %v821 = vadd.f32 0.0, %v820
        %v822 = vpop.f32.mrf.mxu0
        %823 = vmatprep.mubr.f32.mxu0 0.0
        %824 = vmatmul.mubr.f32.gmra.mxu0 %v711
        %v825 = vpop.f32.mrf.mxu0
        %v826 = vadd.f32 0.0, %v825
        %v827 = vpop.f32.mrf.mxu0
        %828 = vmatprep.mubr.f32.mxu0 0.0
        %829 = vmatmul.mubr.f32.gmra.mxu0 %v712
        %v830 = vpop.f32.mrf.mxu0
        %v831 = vadd.f32 0.0, %v830
        %v832 = vpop.f32.mrf.mxu0
        %833 = vmatprep.mubr.f32.mxu0 0.0
        %834 = vmatmul.mubr.f32.gmra.mxu0 %v713
        %v835 = vpop.f32.mrf.mxu0
        %v836 = vadd.f32 0.0, %v835
        %v837 = vpop.f32.mrf.mxu0
        %838 = vmatprep.mubr.f32.mxu0 0.0
        %839 = vmatmul.mubr.f32.gmra.mxu0 %v714
        %v840 = vpop.f32.mrf.mxu0
        %v841 = vadd.f32 0.0, %v840
        %v842 = vpop.f32.mrf.mxu0
        %843 = vmatprep.mubr.f32.mxu0 0.0
        %844 = vmatmul.mubr.f32.gmra.mxu0 %v715
        %v845 = vpop.f32.mrf.mxu0
        %v846 = vadd.f32 0.0, %v845
        %v847 = vpop.f32.mrf.mxu0
        %848 = vmatprep.mubr.f32.mxu0 0.0
        %849 = vmatmul.mubr.f32.gmra.mxu0 %v716
        %v850 = vpop.f32.mrf.mxu0
        %v851 = vadd.f32 0.0, %v850
        %v852 = vpop.f32.mrf.mxu0
        %853 = vmatprep.mubr.f32.mxu0 0.0
        %854 = vmatmul.mubr.f32.gmra.mxu0 %v717
        %v855 = vpop.f32.mrf.mxu0
        %v856 = vadd.f32 0.0, %v855
        %v857 = vpop.f32.mrf.mxu0
        %858 = vmatprep.mubr.f32.mxu0 0.0
        %859 = vmatmul.mubr.f32.gmra.mxu0 %v718
        %v860 = vpop.f32.mrf.mxu0
        %v861 = vadd.f32 0.0, %v860
        %v862 = vpop.f32.mrf.mxu0
        %863 = vmatprep.mubr.f32.mxu0 0.0
        %864 = vmatmul.mubr.f32.gmra.mxu0 %v719
        %v865 = vpop.f32.mrf.mxu0
        %v866 = vadd.f32 0.0, %v865
        %v867 = vpop.f32.mrf.mxu0
        %868 = vmatprep.mubr.f32.mxu0 0.0
        %869 = vmatmul.mubr.f32.gmra.mxu0 %v720
        %v870 = vpop.f32.mrf.mxu0
        %v871 = vadd.f32 0.0, %v870
        %v872 = vpop.f32.mrf.mxu0
        %873 = vmatprep.mubr.f32.mxu0 0.0
        %874 = vmatmul.mubr.f32.gmra.mxu0 %v721
        %v875 = vpop.f32.mrf.mxu0
        %v876 = vadd.f32 0.0, %v875
        %v877 = vpop.f32.mrf.mxu0
        %878 = vmatprep.mubr.f32.mxu0 0.0
        %879 = vmatmul.mubr.f32.gmra.mxu0 %v722
        %v880 = vpop.f32.mrf.mxu0
        %v881 = vadd.f32 0.0, %v880
        %v882 = vpop.f32.mrf.mxu0
        %883 = vmatprep.mubr.f32.mxu0 0.0
        %884 = vmatmul.mubr.f32.gmra.mxu0 %v723
        %v885 = vpop.f32.mrf.mxu0
        %v886 = vadd.f32 0.0, %v885
        %v887 = vpop.f32.mrf.mxu0
        %888 = vmatprep.mubr.f32.mxu0 0.0
        %889 = vmatmul.mubr.f32.gmra.mxu0 %v724
        %v890 = vpop.f32.mrf.mxu0
        %v891 = vadd.f32 0.0, %v890
        %v892 = vpop.f32.mrf.mxu0
        %893 = vmatprep.mubr.f32.mxu0 0.0
        %894 = vmatmul.mubr.f32.gmra.mxu0 %v725
        %v895 = vpop.f32.mrf.mxu0
        %v896 = vadd.f32 0.0, %v895
        %v897 = vpop.f32.mrf.mxu0
        %898 = vmatprep.mubr.f32.mxu0 0.0
        %899 = vmatmul.mubr.f32.gmra.mxu0 %v726
        %v900 = vpop.f32.mrf.mxu0
        %v901 = vadd.f32 0.0, %v900
        %v902 = vpop.f32.mrf.mxu0
        %903 = vmatprep.mubr.f32.mxu0 0.0
        %904 = vmatmul.mubr.f32.gmra.mxu0 %v727
        %v905 = vpop.f32.mrf.mxu0
        %v906 = vadd.f32 0.0, %v905
        %v907 = vpop.f32.mrf.mxu0
        %908 = vmatprep.mubr.f32.mxu0 0.0
        %909 = vmatmul.mubr.f32.gmra.mxu0 %v728
        %v910 = vpop.f32.mrf.mxu0
        %v911 = vadd.f32 0.0, %v910
        %v912 = vpop.f32.mrf.mxu0
        %913 = vmatprep.mubr.f32.mxu0 0.0
        %914 = vmatmul.mubr.f32.gmra.mxu0 %v729
        %v915 = vpop.f32.mrf.mxu0
        %v916 = vadd.f32 0.0, %v915
        %v917 = vpop.f32.mrf.mxu0
        %918 = vmatprep.mubr.f32.mxu0 0.0
        %919 = vmatmul.mubr.f32.gmra.mxu0 %v730
        %v920 = vpop.f32.mrf.mxu0
        %v921 = vadd.f32 0.0, %v920
        %v922 = vpop.f32.mrf.mxu0
        %923 = vmatprep.mubr.f32.mxu0 0.0
        %924 = vmatmul.mubr.f32.gmra.mxu0 %v731
        %v925 = vpop.f32.mrf.mxu0
        %v926 = vadd.f32 0.0, %v925
        %v927 = vpop.f32.mrf.mxu0
        %928 = vmatprep.mubr.f32.mxu0 0.0
        %929 = vmatmul.mubr.f32.gmra.mxu0 %v732
        %v930 = vpop.f32.mrf.mxu0
        %v931 = vadd.f32 0.0, %v930
        %v932 = vpop.f32.mrf.mxu0
        %933 = vmatprep.mubr.f32.mxu0 0.0
        %934 = vmatmul.mubr.f32.gmra.mxu0 %v733
        %v935 = vpop.f32.mrf.mxu0
        %v936 = vadd.f32 0.0, %v935
        %v937 = vpop.f32.mrf.mxu0
        %938 = vmatprep.mubr.f32.mxu0 0.0
        %939 = vmatmul.mubr.f32.gmra.mxu0 %v734
        %v940 = vpop.f32.mrf.mxu0
        %v941 = vadd.f32 0.0, %v940
        %v942 = vpop.f32.mrf.mxu0
        %943 = vmatprep.mubr.f32.mxu0 0.0
        %944 = vmatmul.mubr.f32.gmra.mxu0 %v735
        %v945 = vpop.f32.mrf.mxu0
        %v946 = vadd.f32 0.0, %v945
        %v947 = vpop.f32.mrf.mxu0
        %948 = vmatprep.mubr.f32.mxu0 0.0
        %949 = vmatmul.mubr.f32.gmra.mxu0 %v736
        %v950 = vpop.f32.mrf.mxu0
        %v951 = vadd.f32 0.0, %v950
        %v952 = vpop.f32.mrf.mxu0
        %953 = vmatprep.mubr.f32.mxu0 0.0
        %954 = vmatmul.mubr.f32.gmra.mxu0 %v737
        %v955 = vpop.f32.mrf.mxu0
        %v956 = vadd.f32 0.0, %v955
        %v957 = vpop.f32.mrf.mxu0
        %958 = vmatprep.mubr.f32.mxu0 0.0
        %959 = vmatmul.mubr.f32.gmra.mxu0 %v738
        %v960 = vpop.f32.mrf.mxu0
        %v961 = vadd.f32 0.0, %v960
        %v962 = vpop.f32.mrf.mxu0
        %963 = vdwg.mxu0
        %v964 = vmul.f32 %v675, %v485
        %v965 = vmul.f32 %v676, %v490
        %v966 = vmul.f32 %v677, %v495
        %v967 = vmul.f32 %v678, %v500
        %v968 = vmul.f32 %v679, %v505
        %v969 = vmul.f32 %v680, %v510
        %v970 = vmul.f32 %v681, %v515
        %v971 = vmul.f32 %v682, %v520
        %v972 = vmul.f32 %v683, %v525
        %v973 = vmul.f32 %v684, %v530
        %v974 = vmul.f32 %v685, %v535
        %v975 = vmul.f32 %v686, %v540
        %v976 = vmul.f32 %v687, %v545
        %v977 = vmul.f32 %v688, %v550
        %v978 = vmul.f32 %v689, %v555
        %v979 = vmul.f32 %v690, %v560
        %v980 = vmul.f32 %v691, %v565
        %v981 = vmul.f32 %v692, %v570
        %v982 = vmul.f32 %v693, %v575
        %v983 = vmul.f32 %v694, %v580
        %v984 = vmul.f32 %v695, %v585
        %v985 = vmul.f32 %v696, %v590
        %v986 = vmul.f32 %v697, %v595
        %v987 = vmul.f32 %v698, %v600
        %v988 = vmul.f32 %v699, %v605
        %v989 = vmul.f32 %v700, %v610
        %v990 = vmul.f32 %v701, %v615
        %v991 = vmul.f32 %v702, %v620
        %v992 = vmul.f32 %v703, %v625
        %v993 = vmul.f32 %v704, %v630
        %v994 = vmul.f32 %v705, %v635
        %v995 = vmul.f32 %v706, %v640
        %996 = vmatprep.subr.mxu0 0.0
        %997 = vmatpush1.msra.mxu0 1.0
        %998 = vmatprep.subr.mxu0 0.0
        %999 = vmatpush1.msra.mxu0 1.0
        %1000 = vmatprep.subr.mxu0 0.0
        %1001 = vmatpush1.msra.mxu0 1.0
        %1002 = vmatprep.subr.mxu0 0.0
        %1003 = vmatpush1.msra.mxu0 1.0
        %1004 = vmatprep.subr.mxu0 0.0
        %1005 = vmatpush1.msra.mxu0 1.0
        %1006 = vmatprep.subr.mxu0 0.0
        %1007 = vmatpush1.msra.mxu0 1.0
        %1008 = vmatprep.subr.mxu0 0.0
        %1009 = vmatpush1.msra.mxu0 1.0
        %1010 = vmatprep.subr.mxu0 0.0
        %1011 = vmatpush1.msra.mxu0 1.0
        %1012 = vmatprep.subr.mxu0 0.0
        %1013 = vmatpush1.msra.mxu0 1.0
        %1014 = vmatprep.subr.mxu0 0.0
        %1015 = vmatpush1.msra.mxu0 1.0
        %1016 = vmatprep.subr.mxu0 0.0
        %1017 = vmatpush1.msra.mxu0 1.0
        %1018 = vmatprep.subr.mxu0 0.0
        %1019 = vmatpush1.msra.mxu0 1.0
        %1020 = vmatprep.subr.mxu0 0.0
        %1021 = vmatpush1.msra.mxu0 1.0
        %1022 = vmatprep.subr.mxu0 0.0
        %1023 = vmatpush1.msra.mxu0 1.0
        %1024 = vmatprep.subr.mxu0 0.0
        %1025 = vmatpush1.msra.mxu0 1.0
        %1026 = vmatprep.subr.mxu0 0.0
        %1027 = vmatpush1.msra.mxu0 1.0
        %1028 = vmatprep.subr.mxu0 0.0
        %1029 = vmatpush2.msra.mxu0 0.0
        %1030 = vmatprep.subr.mxu0 0.0
        %1031 = vmatpush2.msra.mxu0 0.0
        %1032 = vmatprep.subr.mxu0 0.0
        %1033 = vmatpush2.msra.mxu0 0.0
        %1034 = vmatprep.subr.mxu0 0.0
        %1035 = vmatpush2.msra.mxu0 0.0
        %1036 = vmatprep.subr.mxu0 0.0
        %1037 = vmatpush2.msra.mxu0 0.0
        %1038 = vmatprep.subr.mxu0 0.0
        %1039 = vmatpush2.msra.mxu0 0.0
        %1040 = vmatprep.subr.mxu0 0.0
        %1041 = vmatpush2.msra.mxu0 0.0
        %1042 = vmatprep.subr.mxu0 0.0
        %1043 = vmatpush2.msra.mxu0 0.0
        %1044 = vmatprep.subr.mxu0 0.0
        %1045 = vmatpush2.msra.mxu0 0.0
        %1046 = vmatprep.subr.mxu0 0.0
        %1047 = vmatpush2.msra.mxu0 0.0
        %1048 = vmatprep.subr.mxu0 0.0
        %1049 = vmatpush2.msra.mxu0 0.0
        %1050 = vmatprep.subr.mxu0 0.0
        %1051 = vmatpush2.msra.mxu0 0.0
        %1052 = vmatprep.subr.mxu0 0.0
        %1053 = vmatpush2.msra.mxu0 0.0
        %1054 = vmatprep.subr.mxu0 0.0
        %1055 = vmatpush2.msra.mxu0 0.0
        %1056 = vmatprep.subr.mxu0 0.0
        %1057 = vmatpush2.msra.mxu0 0.0
        %1058 = vmatprep.subr.mxu0 0.0
        %1059 = vmatpush2.msra.mxu0 0.0
        %1060 = vmatprep.mubr.f32.mxu0 0.0
        %1061 = vmatmul.mubr.f32.gmra.mxu0 %v964
        %v1062 = vpop.f32.mrf.mxu0
        %v1063 = vadd.f32 0.0, %v1062
        %v1064 = vpop.f32.mrf.mxu0
        %1065 = vmatprep.mubr.f32.mxu0 0.0
        %1066 = vmatmul.mubr.f32.gmra.mxu0 %v965
        %v1067 = vpop.f32.mrf.mxu0
        %v1068 = vadd.f32 0.0, %v1067
        %v1069 = vpop.f32.mrf.mxu0
        %1070 = vmatprep.mubr.f32.mxu0 0.0
        %1071 = vmatmul.mubr.f32.gmra.mxu0 %v966
        %v1072 = vpop.f32.mrf.mxu0
        %v1073 = vadd.f32 0.0, %v1072
        %v1074 = vpop.f32.mrf.mxu0
        %1075 = vmatprep.mubr.f32.mxu0 0.0
        %1076 = vmatmul.mubr.f32.gmra.mxu0 %v967
        %v1077 = vpop.f32.mrf.mxu0
        %v1078 = vadd.f32 0.0, %v1077
        %v1079 = vpop.f32.mrf.mxu0
        %1080 = vmatprep.mubr.f32.mxu0 0.0
        %1081 = vmatmul.mubr.f32.gmra.mxu0 %v968
        %v1082 = vpop.f32.mrf.mxu0
        %v1083 = vadd.f32 0.0, %v1082
        %v1084 = vpop.f32.mrf.mxu0
        %1085 = vmatprep.mubr.f32.mxu0 0.0
        %1086 = vmatmul.mubr.f32.gmra.mxu0 %v969
        %v1087 = vpop.f32.mrf.mxu0
        %v1088 = vadd.f32 0.0, %v1087
        %v1089 = vpop.f32.mrf.mxu0
        %1090 = vmatprep.mubr.f32.mxu0 0.0
        %1091 = vmatmul.mubr.f32.gmra.mxu0 %v970
        %v1092 = vpop.f32.mrf.mxu0
        %v1093 = vadd.f32 0.0, %v1092
        %v1094 = vpop.f32.mrf.mxu0
        %1095 = vmatprep.mubr.f32.mxu0 0.0
        %1096 = vmatmul.mubr.f32.gmra.mxu0 %v971
        %v1097 = vpop.f32.mrf.mxu0
        %v1098 = vadd.f32 0.0, %v1097
        %v1099 = vpop.f32.mrf.mxu0
        %1100 = vmatprep.mubr.f32.mxu0 0.0
        %1101 = vmatmul.mubr.f32.gmra.mxu0 %v972
        %v1102 = vpop.f32.mrf.mxu0
        %v1103 = vadd.f32 0.0, %v1102
        %v1104 = vpop.f32.mrf.mxu0
        %1105 = vmatprep.mubr.f32.mxu0 0.0
        %1106 = vmatmul.mubr.f32.gmra.mxu0 %v973
        %v1107 = vpop.f32.mrf.mxu0
        %v1108 = vadd.f32 0.0, %v1107
        %v1109 = vpop.f32.mrf.mxu0
        %1110 = vmatprep.mubr.f32.mxu0 0.0
        %1111 = vmatmul.mubr.f32.gmra.mxu0 %v974
        %v1112 = vpop.f32.mrf.mxu0
        %v1113 = vadd.f32 0.0, %v1112
        %v1114 = vpop.f32.mrf.mxu0
        %1115 = vmatprep.mubr.f32.mxu0 0.0
        %1116 = vmatmul.mubr.f32.gmra.mxu0 %v975
        %v1117 = vpop.f32.mrf.mxu0
        %v1118 = vadd.f32 0.0, %v1117
        %v1119 = vpop.f32.mrf.mxu0
        %1120 = vmatprep.mubr.f32.mxu0 0.0
        %1121 = vmatmul.mubr.f32.gmra.mxu0 %v976
        %v1122 = vpop.f32.mrf.mxu0
        %v1123 = vadd.f32 0.0, %v1122
        %v1124 = vpop.f32.mrf.mxu0
        %1125 = vmatprep.mubr.f32.mxu0 0.0
        %1126 = vmatmul.mubr.f32.gmra.mxu0 %v977
        %v1127 = vpop.f32.mrf.mxu0
        %v1128 = vadd.f32 0.0, %v1127
        %v1129 = vpop.f32.mrf.mxu0
        %1130 = vmatprep.mubr.f32.mxu0 0.0
        %1131 = vmatmul.mubr.f32.gmra.mxu0 %v978
        %v1132 = vpop.f32.mrf.mxu0
        %v1133 = vadd.f32 0.0, %v1132
        %v1134 = vpop.f32.mrf.mxu0
        %1135 = vmatprep.mubr.f32.mxu0 0.0
        %1136 = vmatmul.mubr.f32.gmra.mxu0 %v979
        %v1137 = vpop.f32.mrf.mxu0
        %v1138 = vadd.f32 0.0, %v1137
        %v1139 = vpop.f32.mrf.mxu0
        %1140 = vmatprep.mubr.f32.mxu0 0.0
        %1141 = vmatmul.mubr.f32.gmra.mxu0 %v980
        %v1142 = vpop.f32.mrf.mxu0
        %v1143 = vadd.f32 0.0, %v1142
        %v1144 = vpop.f32.mrf.mxu0
        %1145 = vmatprep.mubr.f32.mxu0 0.0
        %1146 = vmatmul.mubr.f32.gmra.mxu0 %v981
        %v1147 = vpop.f32.mrf.mxu0
        %v1148 = vadd.f32 0.0, %v1147
        %v1149 = vpop.f32.mrf.mxu0
        %1150 = vmatprep.mubr.f32.mxu0 0.0
        %1151 = vmatmul.mubr.f32.gmra.mxu0 %v982
        %v1152 = vpop.f32.mrf.mxu0
        %v1153 = vadd.f32 0.0, %v1152
        %v1154 = vpop.f32.mrf.mxu0
        %1155 = vmatprep.mubr.f32.mxu0 0.0
        %1156 = vmatmul.mubr.f32.gmra.mxu0 %v983
        %v1157 = vpop.f32.mrf.mxu0
        %v1158 = vadd.f32 0.0, %v1157
        %v1159 = vpop.f32.mrf.mxu0
        %1160 = vmatprep.mubr.f32.mxu0 0.0
        %1161 = vmatmul.mubr.f32.gmra.mxu0 %v984
        %v1162 = vpop.f32.mrf.mxu0
        %v1163 = vadd.f32 0.0, %v1162
        %v1164 = vpop.f32.mrf.mxu0
        %1165 = vmatprep.mubr.f32.mxu0 0.0
        %1166 = vmatmul.mubr.f32.gmra.mxu0 %v985
        %v1167 = vpop.f32.mrf.mxu0
        %v1168 = vadd.f32 0.0, %v1167
        %v1169 = vpop.f32.mrf.mxu0
        %1170 = vmatprep.mubr.f32.mxu0 0.0
        %1171 = vmatmul.mubr.f32.gmra.mxu0 %v986
        %v1172 = vpop.f32.mrf.mxu0
        %v1173 = vadd.f32 0.0, %v1172
        %v1174 = vpop.f32.mrf.mxu0
        %1175 = vmatprep.mubr.f32.mxu0 0.0
        %1176 = vmatmul.mubr.f32.gmra.mxu0 %v987
        %v1177 = vpop.f32.mrf.mxu0
        %v1178 = vadd.f32 0.0, %v1177
        %v1179 = vpop.f32.mrf.mxu0
        %1180 = vmatprep.mubr.f32.mxu0 0.0
        %1181 = vmatmul.mubr.f32.gmra.mxu0 %v988
        %v1182 = vpop.f32.mrf.mxu0
        %v1183 = vadd.f32 0.0, %v1182
        %v1184 = vpop.f32.mrf.mxu0
        %1185 = vmatprep.mubr.f32.mxu0 0.0
        %1186 = vmatmul.mubr.f32.gmra.mxu0 %v989
        %v1187 = vpop.f32.mrf.mxu0
        %v1188 = vadd.f32 0.0, %v1187
        %v1189 = vpop.f32.mrf.mxu0
        %1190 = vmatprep.mubr.f32.mxu0 0.0
        %1191 = vmatmul.mubr.f32.gmra.mxu0 %v990
        %v1192 = vpop.f32.mrf.mxu0
        %v1193 = vadd.f32 0.0, %v1192
        %v1194 = vpop.f32.mrf.mxu0
        %1195 = vmatprep.mubr.f32.mxu0 0.0
        %1196 = vmatmul.mubr.f32.gmra.mxu0 %v991
        %v1197 = vpop.f32.mrf.mxu0
        %v1198 = vadd.f32 0.0, %v1197
        %v1199 = vpop.f32.mrf.mxu0
        %1200 = vmatprep.mubr.f32.mxu0 0.0
        %1201 = vmatmul.mubr.f32.gmra.mxu0 %v992
        %v1202 = vpop.f32.mrf.mxu0
        %v1203 = vadd.f32 0.0, %v1202
        %v1204 = vpop.f32.mrf.mxu0
        %1205 = vmatprep.mubr.f32.mxu0 0.0
        %1206 = vmatmul.mubr.f32.gmra.mxu0 %v993
        %v1207 = vpop.f32.mrf.mxu0
        %v1208 = vadd.f32 0.0, %v1207
        %v1209 = vpop.f32.mrf.mxu0
        %1210 = vmatprep.mubr.f32.mxu0 0.0
        %1211 = vmatmul.mubr.f32.gmra.mxu0 %v994
        %v1212 = vpop.f32.mrf.mxu0
        %v1213 = vadd.f32 0.0, %v1212
        %v1214 = vpop.f32.mrf.mxu0
        %1215 = vmatprep.mubr.f32.mxu0 0.0
        %1216 = vmatmul.mubr.f32.gmra.mxu0 %v995
        %v1217 = vpop.f32.mrf.mxu0
        %v1218 = vadd.f32 0.0, %v1217
        %v1219 = vpop.f32.mrf.mxu0
        %1220 = vdwg.mxu0
        %s1221 = sld [smem:[#allocation2]]
        %1254 = vrot.lane.b32.xlu0 %v1063, 1
        %v1255 = vpop.permute.xlu0 %1254
        %1256 = vrot.lane.b32.xlu0 %v1068, 1
        %v1257 = vpop.permute.xlu0 %1256
        %1258 = vrot.lane.b32.xlu0 %v1073, 1
        %v1259 = vpop.permute.xlu0 %1258
        %1260 = vrot.lane.b32.xlu0 %v1078, 1
        %v1261 = vpop.permute.xlu0 %1260
        %1262 = vrot.lane.b32.xlu0 %v1083, 1
        %v1263 = vpop.permute.xlu0 %1262
        %1264 = vrot.lane.b32.xlu0 %v1088, 1
        %v1265 = vpop.permute.xlu0 %1264
        %1266 = vrot.lane.b32.xlu0 %v1093, 1
        %v1267 = vpop.permute.xlu0 %1266
        %1268 = vrot.lane.b32.xlu0 %v1098, 1
        %v1269 = vpop.permute.xlu0 %1268
        %1270 = vrot.lane.b32.xlu0 %v1103, 1
        %v1271 = vpop.permute.xlu0 %1270
        %1272 = vrot.lane.b32.xlu0 %v1108, 1
        %v1273 = vpop.permute.xlu0 %1272
        %1274 = vrot.lane.b32.xlu0 %v1113, 1
        %v1275 = vpop.permute.xlu0 %1274
        %1276 = vrot.lane.b32.xlu0 %v1118, 1
        %v1277 = vpop.permute.xlu0 %1276
        %1278 = vrot.lane.b32.xlu0 %v1123, 1
        %v1279 = vpop.permute.xlu0 %1278
        %1280 = vrot.lane.b32.xlu0 %v1128, 1
        %v1281 = vpop.permute.xlu0 %1280
        %1282 = vrot.lane.b32.xlu0 %v1133, 1
        %v1283 = vpop.permute.xlu0 %1282
        %1284 = vrot.lane.b32.xlu0 %v1138, 1
        %v1285 = vpop.permute.xlu0 %1284
        %1286 = vrot.lane.b32.xlu0 %v1143, 1
        %v1287 = vpop.permute.xlu0 %1286
        %1288 = vrot.lane.b32.xlu0 %v1148, 1
        %v1289 = vpop.permute.xlu0 %1288
        %1290 = vrot.lane.b32.xlu0 %v1153, 1
        %v1291 = vpop.permute.xlu0 %1290
        %1292 = vrot.lane.b32.xlu0 %v1158, 1
        %v1293 = vpop.permute.xlu0 %1292
        %1294 = vrot.lane.b32.xlu0 %v1163, 1
        %v1295 = vpop.permute.xlu0 %1294
        %1296 = vrot.lane.b32.xlu0 %v1168, 1
        %v1297 = vpop.permute.xlu0 %1296
        %1298 = vrot.lane.b32.xlu0 %v1173, 1
        %v1299 = vpop.permute.xlu0 %1298
        %1300 = vrot.lane.b32.xlu0 %v1178, 1
        %v1301 = vpop.permute.xlu0 %1300
        %1302 = vrot.lane.b32.xlu0 %v1183, 1
        %v1303 = vpop.permute.xlu0 %1302
        %1304 = vrot.lane.b32.xlu0 %v1188, 1
        %v1305 = vpop.permute.xlu0 %1304
        %1306 = vrot.lane.b32.xlu0 %v1193, 1
        %v1307 = vpop.permute.xlu0 %1306
        %1308 = vrot.lane.b32.xlu0 %v1198, 1
        %v1309 = vpop.permute.xlu0 %1308
        %1310 = vrot.lane.b32.xlu0 %v1203, 1
        %v1311 = vpop.permute.xlu0 %1310
        %1312 = vrot.lane.b32.xlu0 %v1208, 1
        %v1313 = vpop.permute.xlu0 %1312
        %1314 = vrot.lane.b32.xlu0 %v1213, 1
        %v1315 = vpop.permute.xlu0 %1314
        %1316 = vrot.lane.b32.xlu0 %v1218, 1
        %v1317 = vpop.permute.xlu0 %1316
        %vm1350 = vcmask 7168
        %v1351 = vsel %vm1350, %v806, %v1255
        %v1352 = vsel %vm1350, %v811, %v1257
        %v1353 = vsel %vm1350, %v816, %v1259
        %v1354 = vsel %vm1350, %v821, %v1261
        %v1355 = vsel %vm1350, %v826, %v1263
        %v1356 = vsel %vm1350, %v831, %v1265
        %v1357 = vsel %vm1350, %v836, %v1267
        %v1358 = vsel %vm1350, %v841, %v1269
        %v1359 = vsel %vm1350, %v846, %v1271
        %v1360 = vsel %vm1350, %v851, %v1273
        %v1361 = vsel %vm1350, %v856, %v1275
        %v1362 = vsel %vm1350, %v861, %v1277
        %v1363 = vsel %vm1350, %v866, %v1279
        %v1364 = vsel %vm1350, %v871, %v1281
        %v1365 = vsel %vm1350, %v876, %v1283
        %v1366 = vsel %vm1350, %v881, %v1285
        %v1367 = vsel %vm1350, %v886, %v1287
        %v1368 = vsel %vm1350, %v891, %v1289
        %v1369 = vsel %vm1350, %v896, %v1291
        %v1370 = vsel %vm1350, %v901, %v1293
        %v1371 = vsel %vm1350, %v906, %v1295
        %v1372 = vsel %vm1350, %v911, %v1297
        %v1373 = vsel %vm1350, %v916, %v1299
        %v1374 = vsel %vm1350, %v921, %v1301
        %v1375 = vsel %vm1350, %v926, %v1303
        %v1376 = vsel %vm1350, %v931, %v1305
        %v1377 = vsel %vm1350, %v936, %v1307
        %v1378 = vsel %vm1350, %v941, %v1309
        %v1379 = vsel %vm1350, %v946, %v1311
        %v1380 = vsel %vm1350, %v951, %v1313
        %v1381 = vsel %vm1350, %v956, %v1315
        %v1382 = vsel %vm1350, %v961, %v1317
        %v1383 = vstv %s1221
        %v1384 = vadd.f32 %v1351, %v1383
        %v1385 = vadd.f32 %v1352, %v1383
        %v1386 = vadd.f32 %v1353, %v1383
        %v1387 = vadd.f32 %v1354, %v1383
        %v1388 = vadd.f32 %v1355, %v1383
        %v1389 = vadd.f32 %v1356, %v1383
        %v1390 = vadd.f32 %v1357, %v1383
        %v1391 = vadd.f32 %v1358, %v1383
        %v1392 = vadd.f32 %v1359, %v1383
        %v1393 = vadd.f32 %v1360, %v1383
        %v1394 = vadd.f32 %v1361, %v1383
        %v1395 = vadd.f32 %v1362, %v1383
        %v1396 = vadd.f32 %v1363, %v1383
        %v1397 = vadd.f32 %v1364, %v1383
        %v1398 = vadd.f32 %v1365, %v1383
        %v1399 = vadd.f32 %v1366, %v1383
        %v1400 = vadd.f32 %v1367, %v1383
        %v1401 = vadd.f32 %v1368, %v1383
        %v1402 = vadd.f32 %v1369, %v1383
        %v1403 = vadd.f32 %v1370, %v1383
        %v1404 = vadd.f32 %v1371, %v1383
        %v1405 = vadd.f32 %v1372, %v1383
        %v1406 = vadd.f32 %v1373, %v1383
        %v1407 = vadd.f32 %v1374, %v1383
        %v1408 = vadd.f32 %v1375, %v1383
        %v1409 = vadd.f32 %v1376, %v1383
        %v1410 = vadd.f32 %v1377, %v1383
        %v1411 = vadd.f32 %v1378, %v1383
        %v1412 = vadd.f32 %v1379, %v1383
        %v1413 = vadd.f32 %v1380, %v1383
        %v1414 = vadd.f32 %v1381, %v1383
        %v1415 = vadd.f32 %v1382, %v1383
        %vm1416 = vcmask 15360
        %1417 = vst.msk [vmem:[%s349] sm:$0xff] %vm1416, %v1384
        %1418 = vst.msk [vmem:[%s349 + $0x8] sm:$0xff] %vm1416, %v1385
        %1419 = vst.msk [vmem:[%s349 + $0x10] sm:$0xff] %vm1416, %v1386
        %1420 = vst.msk [vmem:[%s349 + $0x18] sm:$0xff] %vm1416, %v1387
        %1421 = vst.msk [vmem:[%s349 + $0x20] sm:$0xff] %vm1416, %v1388
        %1422 = vst.msk [vmem:[%s349 + $0x28] sm:$0xff] %vm1416, %v1389
        %1423 = vst.msk [vmem:[%s349 + $0x30] sm:$0xff] %vm1416, %v1390
        %1424 = vst.msk [vmem:[%s349 + $0x38] sm:$0xff] %vm1416, %v1391
        %1425 = vst.msk [vmem:[%s349 + $0x40] sm:$0xff] %vm1416, %v1392
        %1426 = vst.msk [vmem:[%s349 + $0x48] sm:$0xff] %vm1416, %v1393
        %1427 = vst.msk [vmem:[%s349 + $0x50] sm:$0xff] %vm1416, %v1394
        %1428 = vst.msk [vmem:[%s349 + $0x58] sm:$0xff] %vm1416, %v1395
        %1429 = vst.msk [vmem:[%s349 + $0x60] sm:$0xff] %vm1416, %v1396
        %1430 = vst.msk [vmem:[%s349 + $0x68] sm:$0xff] %vm1416, %v1397
        %1431 = vst.msk [vmem:[%s349 + $0x70] sm:$0xff] %vm1416, %v1398
        %1432 = vst.msk [vmem:[%s349 + $0x78] sm:$0xff] %vm1416, %v1399
        %1433 = vst.msk [vmem:[%s349 + $0x80] sm:$0xff] %vm1416, %v1400
        %1434 = vst.msk [vmem:[%s349 + $0x88] sm:$0xff] %vm1416, %v1401
        %1435 = vst.msk [vmem:[%s349 + $0x90] sm:$0xff] %vm1416, %v1402
        %1436 = vst.msk [vmem:[%s349 + $0x98] sm:$0xff] %vm1416, %v1403
        %1437 = vst.msk [vmem:[%s349 + $0xa0] sm:$0xff] %vm1416, %v1404
        %1438 = vst.msk [vmem:[%s349 + $0xa8] sm:$0xff] %vm1416, %v1405
        %1439 = vst.msk [vmem:[%s349 + $0xb0] sm:$0xff] %vm1416, %v1406
        %1440 = vst.msk [vmem:[%s349 + $0xb8] sm:$0xff] %vm1416, %v1407
        %1441 = vst.msk [vmem:[%s349 + $0xc0] sm:$0xff] %vm1416, %v1408
        %1442 = vst.msk [vmem:[%s349 + $0xc8] sm:$0xff] %vm1416, %v1409
        %1443 = vst.msk [vmem:[%s349 + $0xd0] sm:$0xff] %vm1416, %v1410
        %1444 = vst.msk [vmem:[%s349 + $0xd8] sm:$0xff] %vm1416, %v1411
        %1445 = vst.msk [vmem:[%s349 + $0xe0] sm:$0xff] %vm1416, %v1412
        %1446 = vst.msk [vmem:[%s349 + $0xe8] sm:$0xff] %vm1416, %v1413
        %1447 = vst.msk [vmem:[%s349 + $0xf0] sm:$0xff] %vm1416, %v1414
        %1448 = vst.msk [vmem:[%s349 + $0xf8] sm:$0xff] %vm1416, %v1415
        %s1449 = sand.u32 %s152, 1
        %s1450 = sand.u32 %s152, 1
        %s1451 = smul.addr %s1450, 256
        %s1452 = scalar_lea.vmem [#allocation10], %s1451
        // Predicated region
        $region57: #{tpu_custom_call.1} parent=39 // pred_check
          %p1453 = pneg %p162
        $region58: #{tpu_custom_call.1} parent=39 // pred_check_branch
          %1455 = sbr.rel (%p1453) target = $region60
        $region59: #{tpu_custom_call.1} parent=39 // pred_region
          %s1456 = smul.u32 32, %s24
          %s1457 = ssub.s32 50, %s1456
          %p1458 = scmp.lt.s32.totalorder %s1457, 32
          %s1459 = scalar_select %p1458, %s1457, 32
          %s1460 = smul.u32 128, %s1459
          %p1461 = scmp.ne.s32.totalorder 0, %s1460
          %s1462 = smul.addr %s1456, 8
          %s1463 = scalar_lea.vmem %s5, %s1462
          // Predicated region
          $region61: #{tpu_custom_call.1} parent=59 // pred_check
            %p1464 = pneg %p1461
          $region62: #{tpu_custom_call.1} parent=59 // pred_check_branch
            %1466 = sbr.rel (%p1464) target = $region64
          $region63: #{tpu_custom_call.1} parent=59 // pred_region
            // Predicated region
            $region65: #{tpu_custom_call.1} parent=63 // pred_check
              _
            $region66: #{tpu_custom_call.1} parent=63 // pred_check_branch
              %1468 = sbr.rel (0) target = $region68
            $region67: #{tpu_custom_call.1} parent=63 // pred_region
              // Predicated region
              $region87: #{tpu_custom_call.1} parent=67 // pred_check
                _
              $region88: #{tpu_custom_call.1} parent=67 // pred_check_branch
                %1580 = sbr.rel (0) target = $region90
              $region89: #{tpu_custom_call.1} parent=67 // pred_region
                %s1581 = sshrl.u32 %s1459, 5
                // While loop
                $region91: #{tpu_custom_call.1} parent=89 // loop_pre_header
                  _
                $region92: #{tpu_custom_call.1} parent=89 // loop_header
                  %s1583 = sphi 0, %s1585
                  %p1584 = scmp.ge.s32.totalorder %s1583, %s1581
                  %s1588 = sphi 0, %s1657
                  %s1589 = sphi %s1452, %s1660
                  %s1590 = sphi %s1463, %s1661
                $region93: #{tpu_custom_call.1} parent=89 // loop_header_branch
                  %1587 = sbr.rel (%p1584) target = $region97
                $region94: #{tpu_custom_call.1} parent=89 // loop_body
                  %v1591 = vld [vmem:[%s1589] sm:$0xff]
                  %1592 = vst [vmem:[%s1590] sm:$0xff] %v1591
                  %v1593 = vld [vmem:[%s1589 + $0x8] sm:$0xff]
                  %1594 = vst [vmem:[%s1590 + $0x8] sm:$0xff] %v1593
                  %v1595 = vld [vmem:[%s1589 + $0x10] sm:$0xff]
                  %1596 = vst [vmem:[%s1590 + $0x10] sm:$0xff] %v1595
                  %v1597 = vld [vmem:[%s1589 + $0x18] sm:$0xff]
                  %1598 = vst [vmem:[%s1590 + $0x18] sm:$0xff] %v1597
                  %v1599 = vld [vmem:[%s1589 + $0x20] sm:$0xff]
                  %1600 = vst [vmem:[%s1590 + $0x20] sm:$0xff] %v1599
                  %v1601 = vld [vmem:[%s1589 + $0x28] sm:$0xff]
                  %1602 = vst [vmem:[%s1590 + $0x28] sm:$0xff] %v1601
                  %v1603 = vld [vmem:[%s1589 + $0x30] sm:$0xff]
                  %1604 = vst [vmem:[%s1590 + $0x30] sm:$0xff] %v1603
                  %v1605 = vld [vmem:[%s1589 + $0x38] sm:$0xff]
                  %1606 = vst [vmem:[%s1590 + $0x38] sm:$0xff] %v1605
                  %v1607 = vld [vmem:[%s1589 + $0x40] sm:$0xff]
                  %1608 = vst [vmem:[%s1590 + $0x40] sm:$0xff] %v1607
                  %v1609 = vld [vmem:[%s1589 + $0x48] sm:$0xff]
                  %1610 = vst [vmem:[%s1590 + $0x48] sm:$0xff] %v1609
                  %v1611 = vld [vmem:[%s1589 + $0x50] sm:$0xff]
                  %1612 = vst [vmem:[%s1590 + $0x50] sm:$0xff] %v1611
                  %v1613 = vld [vmem:[%s1589 + $0x58] sm:$0xff]
                  %1614 = vst [vmem:[%s1590 + $0x58] sm:$0xff] %v1613
                  %v1615 = vld [vmem:[%s1589 + $0x60] sm:$0xff]
                  %1616 = vst [vmem:[%s1590 + $0x60] sm:$0xff] %v1615
                  %v1617 = vld [vmem:[%s1589 + $0x68] sm:$0xff]
                  %1618 = vst [vmem:[%s1590 + $0x68] sm:$0xff] %v1617
                  %v1619 = vld [vmem:[%s1589 + $0x70] sm:$0xff]
                  %1620 = vst [vmem:[%s1590 + $0x70] sm:$0xff] %v1619
                  %v1621 = vld [vmem:[%s1589 + $0x78] sm:$0xff]
                  %1622 = vst [vmem:[%s1590 + $0x78] sm:$0xff] %v1621
                  %v1623 = vld [vmem:[%s1589 + $0x80] sm:$0xff]
                  %1624 = vst [vmem:[%s1590 + $0x80] sm:$0xff] %v1623
                  %v1625 = vld [vmem:[%s1589 + $0x88] sm:$0xff]
                  %1626 = vst [vmem:[%s1590 + $0x88] sm:$0xff] %v1625
                  %v1627 = vld [vmem:[%s1589 + $0x90] sm:$0xff]
                  %1628 = vst [vmem:[%s1590 + $0x90] sm:$0xff] %v1627
                  %v1629 = vld [vmem:[%s1589 + $0x98] sm:$0xff]
                  %1630 = vst [vmem:[%s1590 + $0x98] sm:$0xff] %v1629
                  %v1631 = vld [vmem:[%s1589 + $0xa0] sm:$0xff]
                  %1632 = vst [vmem:[%s1590 + $0xa0] sm:$0xff] %v1631
                  %v1633 = vld [vmem:[%s1589 + $0xa8] sm:$0xff]
                  %1634 = vst [vmem:[%s1590 + $0xa8] sm:$0xff] %v1633
                  %v1635 = vld [vmem:[%s1589 + $0xb0] sm:$0xff]
                  %1636 = vst [vmem:[%s1590 + $0xb0] sm:$0xff] %v1635
                  %v1637 = vld [vmem:[%s1589 + $0xb8] sm:$0xff]
                  %1638 = vst [vmem:[%s1590 + $0xb8] sm:$0xff] %v1637
                  %v1639 = vld [vmem:[%s1589 + $0xc0] sm:$0xff]
                  %1640 = vst [vmem:[%s1590 + $0xc0] sm:$0xff] %v1639
                  %v1641 = vld [vmem:[%s1589 + $0xc8] sm:$0xff]
                  %1642 = vst [vmem:[%s1590 + $0xc8] sm:$0xff] %v1641
                  %v1643 = vld [vmem:[%s1589 + $0xd0] sm:$0xff]
                  %1644 = vst [vmem:[%s1590 + $0xd0] sm:$0xff] %v1643
                  %v1645 = vld [vmem:[%s1589 + $0xd8] sm:$0xff]
                  %1646 = vst [vmem:[%s1590 + $0xd8] sm:$0xff] %v1645
                  %v1647 = vld [vmem:[%s1589 + $0xe0] sm:$0xff]
                  %1648 = vst [vmem:[%s1590 + $0xe0] sm:$0xff] %v1647
                  %v1649 = vld [vmem:[%s1589 + $0xe8] sm:$0xff]
                  %1650 = vst [vmem:[%s1590 + $0xe8] sm:$0xff] %v1649
                  %v1651 = vld [vmem:[%s1589 + $0xf0] sm:$0xff]
                  %1652 = vst [vmem:[%s1590 + $0xf0] sm:$0xff] %v1651
                  %v1653 = vld [vmem:[%s1589 + $0xf8] sm:$0xff]
                  %1654 = vst [vmem:[%s1590 + $0xf8] sm:$0xff] %v1653
                  %s1655 = sadd.s32 1, %s1588
                  %p1656 = scmp.ge.s32.totalorder %s1655, %s1581
                  %s1657 = scalar_select %p1656, 0, %s1655
                  %s1658 = smul.u32 %s1657, 256
                  %s1659 = smul.u32 %s1657, 256
                  %s1660 = scalar_lea.vmem %s1452, %s1658 [#allocation10]
                  %s1661 = scalar_lea.vmem %s1463, %s1659
                $region95: #{tpu_custom_call.1} parent=89 // loop_footer
                  %s1585 = sadd.s32 %s1583, 1
                $region96: #{tpu_custom_call.1} parent=89 // loop_footer_branch
                  %1582 = sbr.rel target = $region92
                $region97: #{tpu_custom_call.1} parent=89 // loop_exit
                  _
                %s1662 = sshrl.u32 %s1459, 5
                %s1663 = sand.u32 %s1459, 31
                %s1664 = smul.u32 %s1662, 32
                %s1665 = smul.u32 8, %s1664
                %s1666 = scalar_lea.vmem %s1452, %s1665 [#allocation10]
                %s1667 = smul.u32 8, %s1664
                %s1668 = scalar_lea.vmem %s1463, %s1667
                // While loop
                $region98: #{tpu_custom_call.1} parent=89 // loop_pre_header
                  _
                $region99: #{tpu_custom_call.1} parent=89 // loop_header
                  %s1670 = sphi 0, %s1672
                  %p1671 = scmp.ge.s32.totalorder %s1670, %s1663
                  %s1675 = sphi 0, %s1682
                  %s1676 = sphi %s1666, %s1685
                  %s1677 = sphi %s1668, %s1686
                $region100: #{tpu_custom_call.1} parent=89 // loop_header_branch
                  %1674 = sbr.rel (%p1671) target = $region104
                $region101: #{tpu_custom_call.1} parent=89 // loop_body
                  %v1678 = vld [vmem:[%s1676] sm:$0xff]
                  %1679 = vst [vmem:[%s1677] sm:$0xff] %v1678
                  %s1680 = sadd.s32 1, %s1675
                  %p1681 = scmp.ge.s32.totalorder %s1680, %s1663
                  %s1682 = scalar_select %p1681, 0, %s1680
                  %s1683 = smul.u32 %s1682, 8
                  %s1684 = smul.u32 %s1682, 8
                  %s1685 = scalar_lea.vmem %s1666, %s1683 [#allocation10]
                  %s1686 = scalar_lea.vmem %s1668, %s1684
                $region102: #{tpu_custom_call.1} parent=89 // loop_footer
                  %s1672 = sadd.s32 %s1670, 1
                $region103: #{tpu_custom_call.1} parent=89 // loop_footer_branch
                  %1669 = sbr.rel target = $region99
                $region104: #{tpu_custom_call.1} parent=89 // loop_exit
                  _
              $region90: #{tpu_custom_call.1} parent=67 // pred_fallthru
                _
              // Predicated region
              $region105: #{tpu_custom_call.1} parent=67 // pred_check
                _
              $region106: #{tpu_custom_call.1} parent=67 // pred_check_branch
                %1688 = sbr.rel target = $region108
              $region107: #{tpu_custom_call.1} parent=67 // pred_region
                _
              $region108: #{tpu_custom_call.1} parent=67 // pred_fallthru
                _
            $region68: #{tpu_custom_call.1} parent=63 // pred_fallthru
              _
            // Predicated region
            $region69: #{tpu_custom_call.1} parent=63 // pred_check
              _
            $region70: #{tpu_custom_call.1} parent=63 // pred_check_branch
              %1470 = sbr.rel target = $region72
            $region71: #{tpu_custom_call.1} parent=63 // pred_region
              %s1472 = ssub.s32 256, 1
              %s1473 = sshrl.u32 %s1459, 5
              // While loop
              $region73: #{tpu_custom_call.1} parent=71 // loop_pre_header
                _
              $region74: #{tpu_custom_call.1} parent=71 // loop_header
                %s1475 = sphi 0, %s1477
                %p1476 = scmp.ge.s32.totalorder %s1475, %s1473
                %s1480 = sphi 0, %s1549
                %s1481 = sphi %s1452, %s1552
                %s1482 = sphi %s1463, %s1553
              $region75: #{tpu_custom_call.1} parent=71 // loop_header_branch
                %1479 = sbr.rel (%p1476) target = $region79
              $region76: #{tpu_custom_call.1} parent=71 // loop_body
                %v1483 = vld [vmem:[%s1481] sm:%s1472]
                %1484 = vst [vmem:[%s1482] sm:%s1472] %v1483
                %v1485 = vld [vmem:[%s1481 + $0x8] sm:%s1472]
                %1486 = vst [vmem:[%s1482 + $0x8] sm:%s1472] %v1485
                %v1487 = vld [vmem:[%s1481 + $0x10] sm:%s1472]
                %1488 = vst [vmem:[%s1482 + $0x10] sm:%s1472] %v1487
                %v1489 = vld [vmem:[%s1481 + $0x18] sm:%s1472]
                %1490 = vst [vmem:[%s1482 + $0x18] sm:%s1472] %v1489
                %v1491 = vld [vmem:[%s1481 + $0x20] sm:%s1472]
                %1492 = vst [vmem:[%s1482 + $0x20] sm:%s1472] %v1491
                %v1493 = vld [vmem:[%s1481 + $0x28] sm:%s1472]
                %1494 = vst [vmem:[%s1482 + $0x28] sm:%s1472] %v1493
                %v1495 = vld [vmem:[%s1481 + $0x30] sm:%s1472]
                %1496 = vst [vmem:[%s1482 + $0x30] sm:%s1472] %v1495
                %v1497 = vld [vmem:[%s1481 + $0x38] sm:%s1472]
                %1498 = vst [vmem:[%s1482 + $0x38] sm:%s1472] %v1497
                %v1499 = vld [vmem:[%s1481 + $0x40] sm:%s1472]
                %1500 = vst [vmem:[%s1482 + $0x40] sm:%s1472] %v1499
                %v1501 = vld [vmem:[%s1481 + $0x48] sm:%s1472]
                %1502 = vst [vmem:[%s1482 + $0x48] sm:%s1472] %v1501
                %v1503 = vld [vmem:[%s1481 + $0x50] sm:%s1472]
                %1504 = vst [vmem:[%s1482 + $0x50] sm:%s1472] %v1503
                %v1505 = vld [vmem:[%s1481 + $0x58] sm:%s1472]
                %1506 = vst [vmem:[%s1482 + $0x58] sm:%s1472] %v1505
                %v1507 = vld [vmem:[%s1481 + $0x60] sm:%s1472]
                %1508 = vst [vmem:[%s1482 + $0x60] sm:%s1472] %v1507
                %v1509 = vld [vmem:[%s1481 + $0x68] sm:%s1472]
                %1510 = vst [vmem:[%s1482 + $0x68] sm:%s1472] %v1509
                %v1511 = vld [vmem:[%s1481 + $0x70] sm:%s1472]
                %1512 = vst [vmem:[%s1482 + $0x70] sm:%s1472] %v1511
                %v1513 = vld [vmem:[%s1481 + $0x78] sm:%s1472]
                %1514 = vst [vmem:[%s1482 + $0x78] sm:%s1472] %v1513
                %v1515 = vld [vmem:[%s1481 + $0x80] sm:%s1472]
                %1516 = vst [vmem:[%s1482 + $0x80] sm:%s1472] %v1515
                %v1517 = vld [vmem:[%s1481 + $0x88] sm:%s1472]
                %1518 = vst [vmem:[%s1482 + $0x88] sm:%s1472] %v1517
                %v1519 = vld [vmem:[%s1481 + $0x90] sm:%s1472]
                %1520 = vst [vmem:[%s1482 + $0x90] sm:%s1472] %v1519
                %v1521 = vld [vmem:[%s1481 + $0x98] sm:%s1472]
                %1522 = vst [vmem:[%s1482 + $0x98] sm:%s1472] %v1521
                %v1523 = vld [vmem:[%s1481 + $0xa0] sm:%s1472]
                %1524 = vst [vmem:[%s1482 + $0xa0] sm:%s1472] %v1523
                %v1525 = vld [vmem:[%s1481 + $0xa8] sm:%s1472]
                %1526 = vst [vmem:[%s1482 + $0xa8] sm:%s1472] %v1525
                %v1527 = vld [vmem:[%s1481 + $0xb0] sm:%s1472]
                %1528 = vst [vmem:[%s1482 + $0xb0] sm:%s1472] %v1527
                %v1529 = vld [vmem:[%s1481 + $0xb8] sm:%s1472]
                %1530 = vst [vmem:[%s1482 + $0xb8] sm:%s1472] %v1529
                %v1531 = vld [vmem:[%s1481 + $0xc0] sm:%s1472]
                %1532 = vst [vmem:[%s1482 + $0xc0] sm:%s1472] %v1531
                %v1533 = vld [vmem:[%s1481 + $0xc8] sm:%s1472]
                %1534 = vst [vmem:[%s1482 + $0xc8] sm:%s1472] %v1533
                %v1535 = vld [vmem:[%s1481 + $0xd0] sm:%s1472]
                %1536 = vst [vmem:[%s1482 + $0xd0] sm:%s1472] %v1535
                %v1537 = vld [vmem:[%s1481 + $0xd8] sm:%s1472]
                %1538 = vst [vmem:[%s1482 + $0xd8] sm:%s1472] %v1537
                %v1539 = vld [vmem:[%s1481 + $0xe0] sm:%s1472]
                %1540 = vst [vmem:[%s1482 + $0xe0] sm:%s1472] %v1539
                %v1541 = vld [vmem:[%s1481 + $0xe8] sm:%s1472]
                %1542 = vst [vmem:[%s1482 + $0xe8] sm:%s1472] %v1541
                %v1543 = vld [vmem:[%s1481 + $0xf0] sm:%s1472]
                %1544 = vst [vmem:[%s1482 + $0xf0] sm:%s1472] %v1543
                %v1545 = vld [vmem:[%s1481 + $0xf8] sm:%s1472]
                %1546 = vst [vmem:[%s1482 + $0xf8] sm:%s1472] %v1545
                %s1547 = sadd.s32 1, %s1480
                %p1548 = scmp.ge.s32.totalorder %s1547, %s1473
                %s1549 = scalar_select %p1548, 0, %s1547
                %s1550 = smul.u32 %s1549, 256
                %s1551 = smul.u32 %s1549, 256
                %s1552 = scalar_lea.vmem %s1452, %s1550 [#allocation10]
                %s1553 = scalar_lea.vmem %s1463, %s1551
              $region77: #{tpu_custom_call.1} parent=71 // loop_footer
                %s1477 = sadd.s32 %s1475, 1
              $region78: #{tpu_custom_call.1} parent=71 // loop_footer_branch
                %1474 = sbr.rel target = $region74
              $region79: #{tpu_custom_call.1} parent=71 // loop_exit
                _
              %s1554 = sshrl.u32 %s1459, 5
              %s1555 = sand.u32 %s1459, 31
              %s1556 = smul.u32 %s1554, 32
              %s1557 = smul.u32 8, %s1556
              %s1558 = scalar_lea.vmem %s1452, %s1557 [#allocation10]
              %s1559 = smul.u32 8, %s1556
              %s1560 = scalar_lea.vmem %s1463, %s1559
              // While loop
              $region80: #{tpu_custom_call.1} parent=71 // loop_pre_header
                _
              $region81: #{tpu_custom_call.1} parent=71 // loop_header
                %s1562 = sphi 0, %s1564
                %p1563 = scmp.ge.s32.totalorder %s1562, %s1555
                %s1567 = sphi 0, %s1574
                %s1568 = sphi %s1558, %s1577
                %s1569 = sphi %s1560, %s1578
              $region82: #{tpu_custom_call.1} parent=71 // loop_header_branch
                %1566 = sbr.rel (%p1563) target = $region86
              $region83: #{tpu_custom_call.1} parent=71 // loop_body
                %v1570 = vld [vmem:[%s1568] sm:%s1472]
                %1571 = vst [vmem:[%s1569] sm:%s1472] %v1570
                %s1572 = sadd.s32 1, %s1567
                %p1573 = scmp.ge.s32.totalorder %s1572, %s1555
                %s1574 = scalar_select %p1573, 0, %s1572
                %s1575 = smul.u32 %s1574, 8
                %s1576 = smul.u32 %s1574, 8
                %s1577 = scalar_lea.vmem %s1558, %s1575 [#allocation10]
                %s1578 = scalar_lea.vmem %s1560, %s1576
              $region84: #{tpu_custom_call.1} parent=71 // loop_footer
                %s1564 = sadd.s32 %s1562, 1
              $region85: #{tpu_custom_call.1} parent=71 // loop_footer_branch
                %1561 = sbr.rel target = $region81
              $region86: #{tpu_custom_call.1} parent=71 // loop_exit
                _
            $region72: #{tpu_custom_call.1} parent=63 // pred_fallthru
              _
          $region64: #{tpu_custom_call.1} parent=59 // pred_fallthru
            _
          %1689 = vnop
        $region60: #{tpu_custom_call.1} parent=39 // pred_fallthru
          _
      $region40: #{tpu_custom_call.1} parent=5 // pred_fallthru
        _
      %p1690 = scmp.le.s32.totalorder 2, %s19
      // Predicated region
      $region109: #{tpu_custom_call.1} parent=5 // pred_check
        %p1691 = pneg %p1690
      $region110: #{tpu_custom_call.1} parent=5 // pred_check_branch
        %1693 = sbr.rel (%p1691) target = $region112
      $region111: #{tpu_custom_call.1} parent=5 // pred_region
        %s1694 = ssub.s32 %s19, 2
        // Predicated region
        $region113: #{tpu_custom_call.1} parent=111 // pred_check
          %p1695 = pneg %p168
        $region114: #{tpu_custom_call.1} parent=111 // pred_check_branch
          %1697 = sbr.rel (%p1695) target = $region116
        $region115: #{tpu_custom_call.1} parent=111 // pred_region
          %s1698 = sand.u32 %s153, 1
          %s1699 = sand.u32 %s153, 1
          %s1700 = smul.addr %s1699, 256
          %s1701 = scalar_lea.vmem [#allocation10], %s1700
        $region116: #{tpu_custom_call.1} parent=111 // pred_fallthru
          _
      $region112: #{tpu_custom_call.1} parent=5 // pred_fallthru
        _
    $region6: #{tpu_custom_call.1} parent=1 // loop_footer
      %s23 = sadd.s32 1, %s19
    $region7: #{tpu_custom_call.1} parent=1 // loop_footer_branch
      %18 = sbr.rel target = $region3
    $region8: #{tpu_custom_call.1} parent=1 // loop_exit
      _
    %1702 = vsyncpa [#allocation4], 1
    %s1703 = scalar_lea.sflag [#allocation4], 1
    %1704 = vsyncpa %s1703, 1
    %1705 = vsyncpa [#allocation6], 1
    %s1706 = scalar_lea.sflag [#allocation6], 1
    %1707 = vsyncpa %s1706, 1
    %1708 = vsyncpa [#allocation9], 1

</llo_original>
